<compile_context>
chip_gen: v7x
topology: tpu7x:2x2x1
jax: 0.10.0
libtpu: 0.0.40
codegen_flags: <defaults>
</compile_context>

<pallas_src>
import jax
import jax.numpy as jnp
from jax.experimental import pallas as pl
from jax.experimental.pallas import tpu as pltpu

F32 = jnp.float32
NEG_SLOPE = 0.2      # LeakyReLU slope used by the 'lrelu' activation
BN_EPS = 1e-5
STD_EPS = 1e-4
LANES = 128

# ----------------------- model hyper-parameters (small) ---------------------
DIM_INPUTS = {"rna": 48, "atac": 64}
MODALITIES = tuple(DIM_INPUTS.keys())
N_MOD = len(MODALITIES)
DIM_X = sum(DIM_INPUTS.values())            # 112
BATCH = 16
BLOCK_B = 8
DIM_ENC_MIDDLE = 32
HIDDENS_UNSHARED = (32, 32)
HIDDENS_Z = (32,)
HIDDENS_C = (16,)
HIDDENS_U = (16,)
DIM_Z, DIM_C, DIM_U = 16, 6, 16
TEMPERATURE = 1.0
INV_TEMP = 1.0 / TEMPERATURE

# ---------------------------- input slab layout ------------------------------
X_OFF = 0
MASK_OFF = DIM_X                            # 112 (8-aligned)
assert MASK_OFF + N_MOD <= LANES


def _align8(n):
    return (n + 7) & ~7


# ------------------------- weight / bias slab layout --------------------------
def _build_w_layout():
    specs = [
        ("u1", DIM_X, 2 * HIDDENS_UNSHARED[0]),               # (112, 64) block-diag
        ("u2", 2 * HIDDENS_UNSHARED[0], 2 * HIDDENS_UNSHARED[1]),
        ("u3", 2 * HIDDENS_UNSHARED[1], 2 * DIM_ENC_MIDDLE),
        ("att", 2 * DIM_ENC_MIDDLE, N_MOD),                    # (64, 2) block-diag
        ("zm", DIM_ENC_MIDDLE, HIDDENS_Z[-1]),
        ("zh", HIDDENS_Z[-1], 2 * DIM_Z),                      # [mu | raw_std]
        ("cm", DIM_Z, HIDDENS_C[-1]),
        ("ch", HIDDENS_C[-1], DIM_C),
        ("umz", DIM_Z, HIDDENS_U[-1]),                         # u-branch z part
        ("umc", DIM_C, HIDDENS_U[-1]),                         # u-branch c part
        ("uh", HIDDENS_U[-1], 2 * DIM_U),                      # [mu | raw_std]
    ]
    layout, row, brow = {}, 0, 0
    for name, fin, fout in specs:
        assert fout <= LANES
        layout[name] = (row, fin, fout, brow)
        row += _align8(fin)
        brow += 1
    return layout, _align8(row), _align8(brow)


W_LAYOUT, W_ROWS, B_ROWS = _build_w_layout()      # W_ROWS = 440, B_ROWS = 16


# --------------------- lane-dense, 8-aligned output layout --------------------
def _build_out_layout():
    fields = [("att", N_MOD), ("fused", DIM_ENC_MIDDLE),
              ("z_mean", DIM_Z), ("z_std", DIM_Z),
              ("c_logits", DIM_C), ("c_probs", DIM_C),
              ("u_mean", DIM_U), ("u_std", DIM_U)]
    offs, o = {}, 0
    for name, w in fields:
        offs[name] = (o, w)
        o += _align8(w)
    assert o <= LANES
    return offs, o


OUT_OFFS, OUT_USED = _build_out_layout()


# ------------------------------ fused Pallas kernel ---------------------------
def _encoder_fused_kernel(in_ref, w_ref, b_ref, out_ref):
    """Entire AttGMMVEncoder forward for one BLOCK_B-row batch block.

    in_ref:  (BLOCK_B, 128) x lanes [0:112), mask flags lanes [112:114)
    w_ref:   (W_ROWS, 128)  all BN-folded weights at static row offsets
    b_ref:   (B_ROWS, 128)  one bias vector per row
    out_ref: (BLOCK_B, 128) lane-dense result slab (see OUT_OFFS layout)
    """
    def lrelu(y):
        return jnp.where(y >= 0.0, y, NEG_SLOPE * y)

    def softplus(y):
        # numerically stable, primitives that lower cleanly (exp/log/abs/max)
        return jnp.maximum(y, 0.0) + jnp.log(1.0 + jnp.exp(-jnp.abs(y)))

    def recip(y):
        # EUP approximate reciprocal + one Newton step for full f32 accuracy.
        r = pl.reciprocal(y, approx=True)
        return r * (2.0 - y * r)

    def wslice(name):
        row, fin, fout, brow = W_LAYOUT[name]
        return w_ref[row:row + fin, 0:fout], b_ref[brow:brow + 1, 0:fout]

    def dense(x, name, act=True):
        w, b = wslice(name)
        y = jnp.dot(x, w, preferred_element_type=jnp.float32) + b
        return lrelu(y) if act else y

    x = in_ref[:, X_OFF:X_OFF + DIM_X]                       # (B, 112)
    m = in_ref[:, MASK_OFF:MASK_OFF + N_MOD]                 # (B, 2)

    # ---- unshared per-omic encoders (block-diagonal W -> 1 matmul / layer) --
    h = dense(x, "u1")                                       # (B, 64)
    h = dense(h, "u2")                                       # (B, 64)
    h = dense(h, "u3")                                       # (B, 64)
    h_rna = h[:, :DIM_ENC_MIDDLE]                            # (B, 32)
    h_atac = h[:, DIM_ENC_MIDDLE:]                           # (B, 32)

    # ---- masked attention fusion: both scores from ONE (64,2) MXU matmul ----
    s = dense(h, "att", act=False)                           # (B, 2)
    s = jnp.where(m > 0.0, s, jnp.float32(-1e30))            # mask BEFORE exp
    mx = jnp.max(s, axis=-1, keepdims=True)
    e = jnp.exp(s - mx) * m                                  # all-missing row -> 0 (no NaN)
    att = e * recip(jnp.sum(e, axis=-1, keepdims=True) + 1e-12)   # (B, 2)
    fused = att[:, 0:1] * h_rna + att[:, 1:2] * h_atac       # (B, 32)

    # ---- z branch: Normal(z_mean, softplus(raw) + eps) ----------------------
    hz = dense(fused, "zm")                                  # (B, 32)
    zhead = dense(hz, "zh", act=False)                       # (B, 32) = [mu | raw]
    z_mean = zhead[:, :DIM_Z]
    z_std = softplus(zhead[:, DIM_Z:]) + STD_EPS

    # ---- c branch on z-mean: categorical logits + tempered softmax ----------
    hc = dense(z_mean, "cm")                                 # (B, 16)
    c_logits = dense(hc, "ch", act=False)                    # (B, 6)
    t = c_logits * INV_TEMP
    t = t - jnp.max(t, axis=-1, keepdims=True)
    ec = jnp.exp(t)
    c_probs = ec * recip(jnp.sum(ec, axis=-1, keepdims=True))

    # ---- u branch on [z_mean, c_probs] WITHOUT an in-kernel concat ----------
    wz, bu = wslice("umz")
    wc, _ = wslice("umc")
    hu = lrelu(jnp.dot(z_mean, wz, preferred_element_type=jnp.float32)
               + jnp.dot(c_probs, wc, preferred_element_type=jnp.float32) + bu)
    uhead = dense(hu, "uh", act=False)                       # (B, 32) = [mu | raw]
    u_mean = uhead[:, :DIM_U]
    u_std = softplus(uhead[:, DIM_U:]) + STD_EPS

    # ---- single lane-dense, 8-aligned output store ---------------------------
    fields = [("att", att), ("fused", fused), ("z_mean", z_mean),
              ("z_std", z_std), ("c_logits", c_logits), ("c_probs", c_probs),
              ("u_mean", u_mean), ("u_std", u_std)]
    segs, cursor = [], 0
    for name, val in fields:
        off, w = OUT_OFFS[name]
        assert off == cursor
        segs.append(val)
        pad_w = _align8(w) - w
        if pad_w:
            segs.append(jnp.zeros((BLOCK_B, pad_w), F32))
        cursor += _align8(w)
    if LANES - cursor:
        segs.append(jnp.zeros((BLOCK_B, LANES - cursor), F32))
    out_ref[...] = jnp.concatenate(segs, axis=-1)


# ------------------------------ parameter init --------------------------------
def _init_linear(key, fin, fout):
    w = jax.random.normal(key, (fin, fout), F32) / jnp.sqrt(jnp.float32(fin))
    b = jnp.zeros((1, fout), F32)
    return w, b


def _init_bn(fout):
    return (jnp.ones((1, fout), F32), jnp.zeros((1, fout), F32),
            jnp.zeros((1, fout), F32), jnp.ones((1, fout), F32))


def _init_mlp(key, dims):
    layers = []
    for fin, fout in zip(dims[:-1], dims[1:]):
        key, sub = jax.random.split(key)
        w, b = _init_linear(sub, fin, fout)
        g, beta, mean, var = _init_bn(fout)
        layers.append((w, b, g, beta, mean, var))
    return key, layers


def init_params(key):
    p = {"unshared": {}}
    for name, inc in DIM_INPUTS.items():
        key, layers = _init_mlp(key, (inc, *HIDDENS_UNSHARED, DIM_ENC_MIDDLE))
        p["unshared"][name] = layers
    key, sub = jax.random.split(key)
    p["att_w"], p["att_b"] = _init_linear(sub, DIM_ENC_MIDDLE, 1)
    key, p["z_mlp"] = _init_mlp(key, (DIM_ENC_MIDDLE, *HIDDENS_Z))
    key, k1, k2 = jax.random.split(key, 3)
    p["z_mu"] = _init_linear(k1, HIDDENS_Z[-1], DIM_Z)
    p["z_std"] = _init_linear(k2, HIDDENS_Z[-1], DIM_Z)
    key, p["c_mlp"] = _init_mlp(key, (DIM_Z, *HIDDENS_C))
    key, kc = jax.random.split(key)
    p["c_head"] = _init_linear(kc, HIDDENS_C[-1], DIM_C)
    key, p["u_mlp"] = _init_mlp(key, (DIM_Z + DIM_C, *HIDDENS_U))
    key, k1, k2 = jax.random.split(key, 3)
    p["u_mu"] = _init_linear(k1, HIDDENS_U[-1], DIM_U)
    p["u_std"] = _init_linear(k2, HIDDENS_U[-1], DIM_U)
    return p


# ------------- parameter prep: fold BN, merge modalities, pack slabs ----------
def prep_params(params):
    """Fold eval-mode BN into the linears and pack EVERYTHING into two slabs."""
    def fold(layer):
        w, b, g, beta, mean, var = layer
        scale = g * jax.lax.rsqrt(var + BN_EPS)              # (1, fout)
        return w * scale, (b - mean) * scale + beta

    rna = [fold(l) for l in params["unshared"]["rna"]]
    atac = [fold(l) for l in params["unshared"]["atac"]]

    def blockdiag(lr, la):
        wr, br = lr
        wa, ba = la
        w = jnp.zeros((wr.shape[0] + wa.shape[0], wr.shape[1] + wa.shape[1]), F32)
        w = w.at[:wr.shape[0], :wr.shape[1]].set(wr)
        w = w.at[wr.shape[0]:, wr.shape[1]:].set(wa)
        return w, jnp.concatenate([br, ba], axis=-1)

    u1w, u1b = blockdiag(rna[0], atac[0])                    # (112, 64)
    u2w, u2b = blockdiag(rna[1], atac[1])                    # (64, 64)
    u3w, u3b = blockdiag(rna[2], atac[2])                    # (64, 64)

    att_w, att_b = params["att_w"], params["att_b"]          # (32,1), (1,1)
    attw = jnp.zeros((2 * DIM_ENC_MIDDLE, N_MOD), F32)       # shared head, block-diag
    attw = attw.at[:DIM_ENC_MIDDLE, 0:1].set(att_w)
    attw = attw.at[DIM_ENC_MIDDLE:, 1:2].set(att_w)
    attb = jnp.concatenate([att_b, att_b], axis=-1)          # (1, 2)

    zmw, zmb = fold(params["z_mlp"][0])
    cmw, cmb = fold(params["c_mlp"][0])
    umw, umb = fold(params["u_mlp"][0])
    umzw, umcw = umw[:DIM_Z], umw[DIM_Z:]                    # split -> no in-kernel concat

    zhw = jnp.concatenate([params["z_mu"][0], params["z_std"][0]], axis=-1)
    zhb = jnp.concatenate([params["z_mu"][1], params["z_std"][1]], axis=-1)
    uhw = jnp.concatenate([params["u_mu"][0], params["u_std"][0]], axis=-1)
    uhb = jnp.concatenate([params["u_mu"][1], params["u_std"][1]], axis=-1)
    chw, chb = params["c_head"]

    entries = {
        "u1": (u1w, u1b), "u2": (u2w, u2b), "u3": (u3w, u3b),
        "att": (attw, attb), "zm": (zmw, zmb), "zh": (zhw, zhb),
        "cm": (cmw, cmb), "ch": (chw, chb),
        "umz": (umzw, umb),
        "umc": (umcw, jnp.zeros((1, HIDDENS_U[-1]), F32)),   # bias added on z part
        "uh": (uhw, uhb),
    }

    w_slab = jnp.zeros((W_ROWS, LANES), F32)
    b_slab = jnp.zeros((B_ROWS, LANES), F32)
    for name, (w, b) in entries.items():
        row, fin, fout, brow = W_LAYOUT[name]
        assert w.shape == (fin, fout), (name, w.shape, (fin, fout))
        w_slab = w_slab.at[row:row + fin, :fout].set(w)
        b_slab = b_slab.at[brow:brow + 1, :fout].set(b.reshape(1, fout))
    return w_slab, b_slab


# --------------------------------- forward -------------------------------------
def mmaavinet_forward(xs, mask_bm, w_slab, b_slab):
    """xs: dict name -> (B, dim_inputs[name]); mask_bm: (B, N_MOD) present flags."""
    B = mask_bm.shape[0]
    assert B % BLOCK_B == 0

    # single lane-dense input slab: x | mask | pad  (one unmasked input DMA)
    pad = jnp.zeros((B, LANES - DIM_X - N_MOD), F32)
    in_slab = jnp.concatenate([xs[n] for n in MODALITIES] + [mask_bm, pad], axis=-1)

    flops = 2 * B * sum(fin * fout for (_, fin, fout, _) in W_LAYOUT.values())
    transcendentals = B * (N_MOD + DIM_C + 2 * DIM_Z + 2 * DIM_U)
    bytes_accessed = 4 * (2 * B * LANES + W_ROWS * LANES + B_ROWS * LANES)

    slab = pl.pallas_call(
        _encoder_fused_kernel,
        grid=(B // BLOCK_B,),
        in_specs=[
            pl.BlockSpec((BLOCK_B, LANES), lambda i: (i, 0)),   # batch block
            pl.BlockSpec((W_ROWS, LANES), lambda i: (0, 0)),    # weights stay resident
            pl.BlockSpec((B_ROWS, LANES), lambda i: (0, 0)),    # biases stay resident
        ],
        out_specs=pl.BlockSpec((BLOCK_B, LANES), lambda i: (i, 0)),
        out_shape=jax.ShapeDtypeStruct((B, LANES), F32),
        compiler_params=pltpu.CompilerParams(dimension_semantics=("parallel",)),
        cost_estimate=pl.CostEstimate(flops=flops,
                                      transcendentals=transcendentals,
                                      bytes_accessed=bytes_accessed),
    )(in_slab, w_slab, b_slab)

    def cut(name):
        o, w = OUT_OFFS[name]
        return slab[:, o:o + w]

    att_bm = cut("att")                                        # (B, M)
    return {
        "att": jnp.transpose(att_bm)[:, :, None],              # (M, B, 1)
        "fused": cut("fused"),                                 # (B, D_mid)
        "z_mean": cut("z_mean"), "z_std": cut("z_std"),        # q(z|x) Normal params
        "c_logits": cut("c_logits"), "c_probs": cut("c_probs"),  # q(c|.)
        "u_mean": cut("u_mean"), "u_std": cut("u_std"),        # q(u|.) Normal params
    }


# ----------------------------------- main --------------------------------------
if __name__ == "__main__":
    key = jax.random.PRNGKey(0)
    key, pkey = jax.random.split(key)
    params = init_params(pkey)
    w_slab, b_slab = prep_params(params)

    # deterministic inputs; mosaic data: 'atac' missing for the last 6 rows and
    # the very last row has ALL modalities missing (exercises the NaN guard).
    xs = {}
    for name, inc in DIM_INPUTS.items():
        key, sub = jax.random.split(key)
        xs[name] = jax.random.normal(sub, (BATCH, inc), F32)
    pres_rna = jnp.ones((BATCH,), F32).at[BATCH - 1].set(0.0)
    pres_atac = (jnp.arange(BATCH) < BATCH - 6).astype(F32)
    mask_bm = jnp.stack([pres_rna, pres_atac], axis=-1)        # (B, M)
    # zero-out features of missing-modality samples, as the data loader would
    xs["rna"] = xs["rna"] * pres_rna[:, None]
    xs["atac"] = xs["atac"] * pres_atac[:, None]

    fwd = jax.jit(mmaavinet_forward)
    out = jax.block_until_ready(fwd(xs, mask_bm, w_slab, b_slab))

    # light sanity checks
    for k, v in out.items():
        assert bool(jnp.all(jnp.isfinite(v))), f"non-finite in {k}"
    assert bool(jnp.all(jnp.abs(out["c_probs"].sum(-1) - 1.0) < 1e-3))
    att_sum = out["att"].sum(0)[:, 0]                          # (B,)
    any_present = mask_bm.sum(-1) > 0
    assert bool(jnp.all(jnp.where(any_present,
                                  jnp.abs(att_sum - 1.0) < 1e-3,
                                  jnp.abs(att_sum) < 1e-3)))
    assert bool(jnp.all(out["z_std"] > 0)) and bool(jnp.all(out["u_std"] > 0))

    print("KERNEL_OK")
</pallas_src>

<mosaic_0001>
module attributes {stable_mosaic.version = 11 : i64} {
  func.func @_encoder_fused_kernel(%arg0: i32, %arg1: memref<8x128xf32, #tpu.memory_space<vmem>>, %arg2: memref<440x128xf32, #tpu.memory_space<vmem>>, %arg3: memref<16x128xf32, #tpu.memory_space<vmem>>, %arg4: memref<8x128xf32, #tpu.memory_space<vmem>>) attributes {dimension_semantics = [#tpu.dimension_semantics<parallel>], iteration_bounds = array<i64: 2>, scalar_prefetch = 0 : i64, scratch_operands = 0 : i64, tpu.core_type = #tpu.core_type<tc>, window_params = [{transform_indices = @transform_0, window_bounds = array<i64: 8, 128>}, {pipeline_mode = #tpu.pipeline_mode<synchronous>, transform_indices = @transform_1, window_bounds = array<i64: 440, 128>}, {pipeline_mode = #tpu.pipeline_mode<synchronous>, transform_indices = @transform_2, window_bounds = array<i64: 16, 128>}, {transform_indices = @transform_3, window_bounds = array<i64: 8, 128>}]} {
    %c0 = arith.constant 0 : index
    %c0_0 = arith.constant 0 : index
    %0 = vector.load %arg1[%c0, %c0_0] : memref<8x128xf32, #tpu.memory_space<vmem>>, vector<8x112xf32>
    %c0_1 = arith.constant 0 : index
    %c112 = arith.constant 112 : index
    %1 = vector.load %arg1[%c0_1, %c112] : memref<8x128xf32, #tpu.memory_space<vmem>>, vector<8x2xf32>
    %c0_2 = arith.constant 0 : index
    %c0_3 = arith.constant 0 : index
    %2 = vector.load %arg2[%c0_2, %c0_3] : memref<440x128xf32, #tpu.memory_space<vmem>>, vector<112x64xf32>
    %c0_4 = arith.constant 0 : index
    %c0_5 = arith.constant 0 : index
    %3 = vector.load %arg3[%c0_4, %c0_5] : memref<16x128xf32, #tpu.memory_space<vmem>>, vector<1x64xf32>
    %cst = arith.constant dense<0.000000e+00> : vector<8x64xf32>
    %4 = tpu.matmul %0, %2, %cst {dimension_numbers = #tpu.dot_dimension_numbers<[1], [0], [0], [1], [0, 0, 1, 1], [], []>} : vector<8x112xf32>, vector<112x64xf32>, vector<8x64xf32> -> vector<8x64xf32>
    %5 = vector.broadcast %3 : vector<1x64xf32> to vector<8x64xf32>
    %6 = arith.addf %4, %5 : vector<8x64xf32>
    %cst_6 = arith.constant 0.000000e+00 : f32
    %7 = vector.broadcast %cst_6 : f32 to vector<8x64xf32>
    %8 = arith.cmpf oge, %6, %7 : vector<8x64xf32>
    %cst_7 = arith.constant 2.000000e-01 : f32
    %9 = vector.broadcast %cst_7 : f32 to vector<8x64xf32>
    %10 = arith.mulf %9, %6 : vector<8x64xf32>
    %11 = arith.select %8, %6, %10 : vector<8x64xi1>, vector<8x64xf32>
    %c112_8 = arith.constant 112 : index
    %c0_9 = arith.constant 0 : index
    %12 = vector.load %arg2[%c112_8, %c0_9] : memref<440x128xf32, #tpu.memory_space<vmem>>, vector<64x64xf32>
    %c1 = arith.constant 1 : index
    %c0_10 = arith.constant 0 : index
    %13 = vector.load %arg3[%c1, %c0_10] : memref<16x128xf32, #tpu.memory_space<vmem>>, vector<1x64xf32>
    %cst_11 = arith.constant dense<0.000000e+00> : vector<8x64xf32>
    %14 = tpu.matmul %11, %12, %cst_11 {dimension_numbers = #tpu.dot_dimension_numbers<[1], [0], [0], [1], [0, 0, 1, 1], [], []>} : vector<8x64xf32>, vector<64x64xf32>, vector<8x64xf32> -> vector<8x64xf32>
    %15 = vector.broadcast %13 : vector<1x64xf32> to vector<8x64xf32>
    %16 = arith.addf %14, %15 : vector<8x64xf32>
    %cst_12 = arith.constant 0.000000e+00 : f32
    %17 = vector.broadcast %cst_12 : f32 to vector<8x64xf32>
    %18 = arith.cmpf oge, %16, %17 : vector<8x64xf32>
    %cst_13 = arith.constant 2.000000e-01 : f32
    %19 = vector.broadcast %cst_13 : f32 to vector<8x64xf32>
    %20 = arith.mulf %19, %16 : vector<8x64xf32>
    %21 = arith.select %18, %16, %20 : vector<8x64xi1>, vector<8x64xf32>
    %c176 = arith.constant 176 : index
    %c0_14 = arith.constant 0 : index
    %22 = vector.load %arg2[%c176, %c0_14] : memref<440x128xf32, #tpu.memory_space<vmem>>, vector<64x64xf32>
    %c2 = arith.constant 2 : index
    %c0_15 = arith.constant 0 : index
    %23 = vector.load %arg3[%c2, %c0_15] : memref<16x128xf32, #tpu.memory_space<vmem>>, vector<1x64xf32>
    %cst_16 = arith.constant dense<0.000000e+00> : vector<8x64xf32>
    %24 = tpu.matmul %21, %22, %cst_16 {dimension_numbers = #tpu.dot_dimension_numbers<[1], [0], [0], [1], [0, 0, 1, 1], [], []>} : vector<8x64xf32>, vector<64x64xf32>, vector<8x64xf32> -> vector<8x64xf32>
    %25 = vector.broadcast %23 : vector<1x64xf32> to vector<8x64xf32>
    %26 = arith.addf %24, %25 : vector<8x64xf32>
    %cst_17 = arith.constant 0.000000e+00 : f32
    %27 = vector.broadcast %cst_17 : f32 to vector<8x64xf32>
    %28 = arith.cmpf oge, %26, %27 : vector<8x64xf32>
    %cst_18 = arith.constant 2.000000e-01 : f32
    %29 = vector.broadcast %cst_18 : f32 to vector<8x64xf32>
    %30 = arith.mulf %29, %26 : vector<8x64xf32>
    %31 = arith.select %28, %26, %30 : vector<8x64xi1>, vector<8x64xf32>
    %32 = vector.extract_strided_slice %31 {offsets = [0, 0], sizes = [8, 32], strides = [1, 1]} : vector<8x64xf32> to vector<8x32xf32>
    %33 = vector.extract_strided_slice %31 {offsets = [0, 32], sizes = [8, 32], strides = [1, 1]} : vector<8x64xf32> to vector<8x32xf32>
    %c240 = arith.constant 240 : index
    %c0_19 = arith.constant 0 : index
    %34 = vector.load %arg2[%c240, %c0_19] : memref<440x128xf32, #tpu.memory_space<vmem>>, vector<64x2xf32>
    %c3 = arith.constant 3 : index
    %c0_20 = arith.constant 0 : index
    %35 = vector.load %arg3[%c3, %c0_20] : memref<16x128xf32, #tpu.memory_space<vmem>>, vector<1x2xf32>
    %cst_21 = arith.constant dense<0.000000e+00> : vector<8x2xf32>
    %36 = tpu.matmul %31, %34, %cst_21 {dimension_numbers = #tpu.dot_dimension_numbers<[1], [0], [0], [1], [0, 0, 1, 1], [], []>} : vector<8x64xf32>, vector<64x2xf32>, vector<8x2xf32> -> vector<8x2xf32>
    %37 = vector.broadcast %35 : vector<1x2xf32> to vector<8x2xf32>
    %38 = arith.addf %36, %37 : vector<8x2xf32>
    %cst_22 = arith.constant 0.000000e+00 : f32
    %39 = vector.broadcast %cst_22 : f32 to vector<8x2xf32>
    %40 = arith.cmpf ogt, %1, %39 : vector<8x2xf32>
    %cst_23 = arith.constant -1.000000e+30 : f32
    %41 = vector.broadcast %cst_23 : f32 to vector<8x2xf32>
    %42 = arith.select %40, %38, %41 : vector<8x2xi1>, vector<8x2xf32>
    %cst_24 = arith.constant dense<0xFF800000> : vector<8xf32>
    %43 = vector.multi_reduction <maximumf>, %42, %cst_24 [1] : vector<8x2xf32> to vector<8xf32>
    %44 = vector.shape_cast %43 : vector<8xf32> to vector<8x1xf32>
    %45 = vector.broadcast %44 : vector<8x1xf32> to vector<8x2xf32>
    %46 = arith.subf %42, %45 : vector<8x2xf32>
    %47 = math.exp %46 : vector<8x2xf32>
    %48 = arith.mulf %47, %1 : vector<8x2xf32>
    %cst_25 = arith.constant dense<0.000000e+00> : vector<8xf32>
    %49 = vector.multi_reduction <add>, %48, %cst_25 [1] : vector<8x2xf32> to vector<8xf32>
    %50 = vector.shape_cast %49 : vector<8xf32> to vector<8x1xf32>
    %cst_26 = arith.constant 9.99999996E-13 : f32
    %51 = vector.broadcast %cst_26 : f32 to vector<8x1xf32>
    %52 = arith.addf %50, %51 : vector<8x1xf32>
    %53 = tpu.reciprocal %52 {approx = true} : vector<8x1xf32> -> vector<8x1xf32>
    %54 = arith.mulf %52, %53 : vector<8x1xf32>
    %cst_27 = arith.constant 2.000000e+00 : f32
    %55 = vector.broadcast %cst_27 : f32 to vector<8x1xf32>
    %56 = arith.subf %55, %54 : vector<8x1xf32>
    %57 = arith.mulf %53, %56 : vector<8x1xf32>
    %58 = vector.broadcast %57 : vector<8x1xf32> to vector<8x2xf32>
    %59 = arith.mulf %48, %58 : vector<8x2xf32>
    %60 = vector.extract_strided_slice %59 {offsets = [0, 0], sizes = [8, 1], strides = [1, 1]} : vector<8x2xf32> to vector<8x1xf32>
    %61 = vector.broadcast %60 : vector<8x1xf32> to vector<8x32xf32>
    %62 = arith.mulf %61, %32 : vector<8x32xf32>
    %63 = vector.extract_strided_slice %59 {offsets = [0, 1], sizes = [8, 1], strides = [1, 1]} : vector<8x2xf32> to vector<8x1xf32>
    %64 = vector.broadcast %63 : vector<8x1xf32> to vector<8x32xf32>
    %65 = arith.mulf %64, %33 : vector<8x32xf32>
    %66 = arith.addf %62, %65 : vector<8x32xf32>
    %c304 = arith.constant 304 : index
    %c0_28 = arith.constant 0 : index
    %67 = vector.load %arg2[%c304, %c0_28] : memref<440x128xf32, #tpu.memory_space<vmem>>, vector<32x32xf32>
    %c4 = arith.constant 4 : index
    %c0_29 = arith.constant 0 : index
    %68 = vector.load %arg3[%c4, %c0_29] : memref<16x128xf32, #tpu.memory_space<vmem>>, vector<1x32xf32>
    %cst_30 = arith.constant dense<0.000000e+00> : vector<8x32xf32>
    %69 = tpu.matmul %66, %67, %cst_30 {dimension_numbers = #tpu.dot_dimension_numbers<[1], [0], [0], [1], [0, 0, 1, 1], [], []>} : vector<8x32xf32>, vector<32x32xf32>, vector<8x32xf32> -> vector<8x32xf32>
    %70 = vector.broadcast %68 : vector<1x32xf32> to vector<8x32xf32>
    %71 = arith.addf %69, %70 : vector<8x32xf32>
    %cst_31 = arith.constant 0.000000e+00 : f32
    %72 = vector.broadcast %cst_31 : f32 to vector<8x32xf32>
    %73 = arith.cmpf oge, %71, %72 : vector<8x32xf32>
    %cst_32 = arith.constant 2.000000e-01 : f32
    %74 = vector.broadcast %cst_32 : f32 to vector<8x32xf32>
    %75 = arith.mulf %74, %71 : vector<8x32xf32>
    %76 = arith.select %73, %71, %75 : vector<8x32xi1>, vector<8x32xf32>
    %c336 = arith.constant 336 : index
    %c0_33 = arith.constant 0 : index
    %77 = vector.load %arg2[%c336, %c0_33] : memref<440x128xf32, #tpu.memory_space<vmem>>, vector<32x32xf32>
    %c5 = arith.constant 5 : index
    %c0_34 = arith.constant 0 : index
    %78 = vector.load %arg3[%c5, %c0_34] : memref<16x128xf32, #tpu.memory_space<vmem>>, vector<1x32xf32>
    %cst_35 = arith.constant dense<0.000000e+00> : vector<8x32xf32>
    %79 = tpu.matmul %76, %77, %cst_35 {dimension_numbers = #tpu.dot_dimension_numbers<[1], [0], [0], [1], [0, 0, 1, 1], [], []>} : vector<8x32xf32>, vector<32x32xf32>, vector<8x32xf32> -> vector<8x32xf32>
    %80 = vector.broadcast %78 : vector<1x32xf32> to vector<8x32xf32>
    %81 = arith.addf %79, %80 : vector<8x32xf32>
    %82 = vector.extract_strided_slice %81 {offsets = [0, 0], sizes = [8, 16], strides = [1, 1]} : vector<8x32xf32> to vector<8x16xf32>
    %83 = vector.extract_strided_slice %81 {offsets = [0, 16], sizes = [8, 16], strides = [1, 1]} : vector<8x32xf32> to vector<8x16xf32>
    %cst_36 = arith.constant 0.000000e+00 : f32
    %84 = vector.broadcast %cst_36 : f32 to vector<8x16xf32>
    %85 = arith.maximumf %83, %84 : vector<8x16xf32>
    %86 = math.absf %83 : vector<8x16xf32>
    %cst_37 = arith.constant 0.000000e+00 : f32
    %87 = vector.broadcast %cst_37 : f32 to vector<8x16xf32>
    %88 = arith.subf %87, %86 : vector<8x16xf32>
    %89 = math.exp %88 : vector<8x16xf32>
    %cst_38 = arith.constant 1.000000e+00 : f32
    %90 = vector.broadcast %cst_38 : f32 to vector<8x16xf32>
    %91 = arith.addf %90, %89 : vector<8x16xf32>
    %92 = math.log %91 : vector<8x16xf32>
    %93 = arith.addf %85, %92 : vector<8x16xf32>
    %cst_39 = arith.constant 9.99999974E-5 : f32
    %94 = vector.broadcast %cst_39 : f32 to vector<8x16xf32>
    %95 = arith.addf %93, %94 : vector<8x16xf32>
    %c368 = arith.constant 368 : index
    %c0_40 = arith.constant 0 : index
    %96 = vector.load %arg2[%c368, %c0_40] : memref<440x128xf32, #tpu.memory_space<vmem>>, vector<16x16xf32>
    %c6 = arith.constant 6 : index
    %c0_41 = arith.constant 0 : index
    %97 = vector.load %arg3[%c6, %c0_41] : memref<16x128xf32, #tpu.memory_space<vmem>>, vector<1x16xf32>
    %cst_42 = arith.constant dense<0.000000e+00> : vector<8x16xf32>
    %98 = tpu.matmul %82, %96, %cst_42 {dimension_numbers = #tpu.dot_dimension_numbers<[1], [0], [0], [1], [0, 0, 1, 1], [], []>} : vector<8x16xf32>, vector<16x16xf32>, vector<8x16xf32> -> vector<8x16xf32>
    %99 = vector.broadcast %97 : vector<1x16xf32> to vector<8x16xf32>
    %100 = arith.addf %98, %99 : vector<8x16xf32>
    %cst_43 = arith.constant 0.000000e+00 : f32
    %101 = vector.broadcast %cst_43 : f32 to vector<8x16xf32>
    %102 = arith.cmpf oge, %100, %101 : vector<8x16xf32>
    %cst_44 = arith.constant 2.000000e-01 : f32
    %103 = vector.broadcast %cst_44 : f32 to vector<8x16xf32>
    %104 = arith.mulf %103, %100 : vector<8x16xf32>
    %105 = arith.select %102, %100, %104 : vector<8x16xi1>, vector<8x16xf32>
    %c384 = arith.constant 384 : index
    %c0_45 = arith.constant 0 : index
    %106 = vector.load %arg2[%c384, %c0_45] : memref<440x128xf32, #tpu.memory_space<vmem>>, vector<16x6xf32>
    %c7 = arith.constant 7 : index
    %c0_46 = arith.constant 0 : index
    %107 = vector.load %arg3[%c7, %c0_46] : memref<16x128xf32, #tpu.memory_space<vmem>>, vector<1x6xf32>
    %cst_47 = arith.constant dense<0.000000e+00> : vector<8x6xf32>
    %108 = tpu.matmul %105, %106, %cst_47 {dimension_numbers = #tpu.dot_dimension_numbers<[1], [0], [0], [1], [0, 0, 1, 1], [], []>} : vector<8x16xf32>, vector<16x6xf32>, vector<8x6xf32> -> vector<8x6xf32>
    %109 = vector.broadcast %107 : vector<1x6xf32> to vector<8x6xf32>
    %110 = arith.addf %108, %109 : vector<8x6xf32>
    %cst_48 = arith.constant 1.000000e+00 : f32
    %111 = vector.broadcast %cst_48 : f32 to vector<8x6xf32>
    %112 = arith.mulf %110, %111 : vector<8x6xf32>
    %cst_49 = arith.constant dense<0xFF800000> : vector<8xf32>
    %113 = vector.multi_reduction <maximumf>, %112, %cst_49 [1] : vector<8x6xf32> to vector<8xf32>
    %114 = vector.shape_cast %113 : vector<8xf32> to vector<8x1xf32>
    %115 = vector.broadcast %114 : vector<8x1xf32> to vector<8x6xf32>
    %116 = arith.subf %112, %115 : vector<8x6xf32>
    %117 = math.exp %116 : vector<8x6xf32>
    %cst_50 = arith.constant dense<0.000000e+00> : vector<8xf32>
    %118 = vector.multi_reduction <add>, %117, %cst_50 [1] : vector<8x6xf32> to vector<8xf32>
    %119 = vector.shape_cast %118 : vector<8xf32> to vector<8x1xf32>
    %120 = tpu.reciprocal %119 {approx = true} : vector<8x1xf32> -> vector<8x1xf32>
    %121 = arith.mulf %119, %120 : vector<8x1xf32>
    %cst_51 = arith.constant 2.000000e+00 : f32
    %122 = vector.broadcast %cst_51 : f32 to vector<8x1xf32>
    %123 = arith.subf %122, %121 : vector<8x1xf32>
    %124 = arith.mulf %120, %123 : vector<8x1xf32>
    %125 = vector.broadcast %124 : vector<8x1xf32> to vector<8x6xf32>
    %126 = arith.mulf %117, %125 : vector<8x6xf32>
    %c400 = arith.constant 400 : index
    %c0_52 = arith.constant 0 : index
    %127 = vector.load %arg2[%c400, %c0_52] : memref<440x128xf32, #tpu.memory_space<vmem>>, vector<16x16xf32>
    %c8 = arith.constant 8 : index
    %c0_53 = arith.constant 0 : index
    %128 = vector.load %arg3[%c8, %c0_53] : memref<16x128xf32, #tpu.memory_space<vmem>>, vector<1x16xf32>
    %c416 = arith.constant 416 : index
    %c0_54 = arith.constant 0 : index
    %129 = vector.load %arg2[%c416, %c0_54] : memref<440x128xf32, #tpu.memory_space<vmem>>, vector<6x16xf32>
    %cst_55 = arith.constant dense<0.000000e+00> : vector<8x16xf32>
    %130 = tpu.matmul %82, %127, %cst_55 {dimension_numbers = #tpu.dot_dimension_numbers<[1], [0], [0], [1], [0, 0, 1, 1], [], []>} : vector<8x16xf32>, vector<16x16xf32>, vector<8x16xf32> -> vector<8x16xf32>
    %cst_56 = arith.constant dense<0.000000e+00> : vector<8x16xf32>
    %131 = tpu.matmul %126, %129, %cst_56 {dimension_numbers = #tpu.dot_dimension_numbers<[1], [0], [0], [1], [0, 0, 1, 1], [], []>} : vector<8x6xf32>, vector<6x16xf32>, vector<8x16xf32> -> vector<8x16xf32>
    %132 = arith.addf %130, %131 : vector<8x16xf32>
    %133 = vector.broadcast %128 : vector<1x16xf32> to vector<8x16xf32>
    %134 = arith.addf %132, %133 : vector<8x16xf32>
    %cst_57 = arith.constant 0.000000e+00 : f32
    %135 = vector.broadcast %cst_57 : f32 to vector<8x16xf32>
    %136 = arith.cmpf oge, %134, %135 : vector<8x16xf32>
    %cst_58 = arith.constant 2.000000e-01 : f32
    %137 = vector.broadcast %cst_58 : f32 to vector<8x16xf32>
    %138 = arith.mulf %137, %134 : vector<8x16xf32>
    %139 = arith.select %136, %134, %138 : vector<8x16xi1>, vector<8x16xf32>
    %c424 = arith.constant 424 : index
    %c0_59 = arith.constant 0 : index
    %140 = vector.load %arg2[%c424, %c0_59] : memref<440x128xf32, #tpu.memory_space<vmem>>, vector<16x32xf32>
    %c10 = arith.constant 10 : index
    %c0_60 = arith.constant 0 : index
    %141 = vector.load %arg3[%c10, %c0_60] : memref<16x128xf32, #tpu.memory_space<vmem>>, vector<1x32xf32>
    %cst_61 = arith.constant dense<0.000000e+00> : vector<8x32xf32>
    %142 = tpu.matmul %139, %140, %cst_61 {dimension_numbers = #tpu.dot_dimension_numbers<[1], [0], [0], [1], [0, 0, 1, 1], [], []>} : vector<8x16xf32>, vector<16x32xf32>, vector<8x32xf32> -> vector<8x32xf32>
    %143 = vector.broadcast %141 : vector<1x32xf32> to vector<8x32xf32>
    %144 = arith.addf %142, %143 : vector<8x32xf32>
    %145 = vector.extract_strided_slice %144 {offsets = [0, 0], sizes = [8, 16], strides = [1, 1]} : vector<8x32xf32> to vector<8x16xf32>
    %146 = vector.extract_strided_slice %144 {offsets = [0, 16], sizes = [8, 16], strides = [1, 1]} : vector<8x32xf32> to vector<8x16xf32>
    %cst_62 = arith.constant 0.000000e+00 : f32
    %147 = vector.broadcast %cst_62 : f32 to vector<8x16xf32>
    %148 = arith.maximumf %146, %147 : vector<8x16xf32>
    %149 = math.absf %146 : vector<8x16xf32>
    %cst_63 = arith.constant 0.000000e+00 : f32
    %150 = vector.broadcast %cst_63 : f32 to vector<8x16xf32>
    %151 = arith.subf %150, %149 : vector<8x16xf32>
    %152 = math.exp %151 : vector<8x16xf32>
    %cst_64 = arith.constant 1.000000e+00 : f32
    %153 = vector.broadcast %cst_64 : f32 to vector<8x16xf32>
    %154 = arith.addf %153, %152 : vector<8x16xf32>
    %155 = math.log %154 : vector<8x16xf32>
    %156 = arith.addf %148, %155 : vector<8x16xf32>
    %cst_65 = arith.constant 9.99999974E-5 : f32
    %157 = vector.broadcast %cst_65 : f32 to vector<8x16xf32>
    %158 = arith.addf %156, %157 : vector<8x16xf32>
    %cst_66 = arith.constant 0.000000e+00 : f32
    %159 = vector.broadcast %cst_66 : f32 to vector<8x6xf32>
    %cst_67 = arith.constant 0.000000e+00 : f32
    %160 = vector.broadcast %cst_67 : f32 to vector<8x2xf32>
    %cst_68 = arith.constant 0.000000e+00 : f32
    %161 = vector.broadcast %cst_68 : f32 to vector<8x2xf32>
    %cst_69 = arith.constant 0.000000e+00 : f32
    %162 = vector.broadcast %cst_69 : f32 to vector<8x8xf32>
    %163 = tpu.concatenate %59, %159, %66, %82, %95, %110, %160, %126, %161, %145, %158, %162 in 1 : vector<8x2xf32>, vector<8x6xf32>, vector<8x32xf32>, vector<8x16xf32>, vector<8x16xf32>, vector<8x6xf32>, vector<8x2xf32>, vector<8x6xf32>, vector<8x2xf32>, vector<8x16xf32>, vector<8x16xf32>, vector<8x8xf32> -> vector<8x128xf32>
    %c0_70 = arith.constant 0 : index
    %c0_71 = arith.constant 0 : index
    %164 = vector.load %arg4[%c0_70, %c0_71] : memref<8x128xf32, #tpu.memory_space<vmem>>, vector<8x128xf32>
    tpu.vector_store %arg4[%c0_70, %c0_71], %163 {strides = array<i32>} : memref<8x128xf32, #tpu.memory_space<vmem>>, vector<8x128xf32>,
    return
  }
  func.func @transform_0(%arg0: i32) -> (i32, i32) {
    %c0_i32 = arith.constant 0 : i32
    %c0_i32_0 = arith.constant 0 : i32
    return %arg0, %c0_i32 : i32, i32
  }
  func.func @transform_1(%arg0: i32) -> (i32, i32) {
    %c0_i32 = arith.constant 0 : i32
    %c0_i32_0 = arith.constant 0 : i32
    %c0_i32_1 = arith.constant 0 : i32
    return %c0_i32, %c0_i32_0 : i32, i32
  }
  func.func @transform_2(%arg0: i32) -> (i32, i32) {
    %c0_i32 = arith.constant 0 : i32
    %c0_i32_0 = arith.constant 0 : i32
    %c0_i32_1 = arith.constant 0 : i32
    return %c0_i32, %c0_i32_0 : i32, i32
  }
  func.func @transform_3(%arg0: i32) -> (i32, i32) {
    %c0_i32 = arith.constant 0 : i32
    %c0_i32_0 = arith.constant 0 : i32
    return %arg0, %c0_i32 : i32, i32
  }
}

</mosaic_0001>

<llo_original>
// kernel: mmaavinet_forward.1
$region0: #{mmaavinet_forward.1}
  #allocation0 [shape = 'u32[]', space=smem, size = 0x4, offset = 0x4, fixed_abs, tag = 'smem constant byte address 0x4 - core index']
  #allocation1 [shape = 'u32[144,128]{1,0:T(1,128)}', space=vmem, size = 0x12000, scoped, tag = 'internal scratch']
  %s0 = inlined_call_operand.vmem [shape: f32[16,128], index: 0, kind: input, shape index: {}]
  %s1 = inlined_call_operand.hbm [shape: f32[440,128], index: 1, kind: input, shape index: {}]
  %s2 = inlined_call_operand.vmem [shape: f32[16,128], index: 2, kind: input, shape index: {}]
  %s3 = inlined_call_operand.vmem [shape: f32[16,128], index: 3, kind: output, shape index: {}]
  %s4 = sld [smem:[#allocation0]]
  $region49: #{mmaavinet_forward.1} parent=0
    _
  %s6 = ssub.s32 1, %s4
  %s7 = scalar_select 0, %s6, %s4
  $region1: #{mmaavinet_forward.1} parent=0
    #allocation2 [shape = 'u8[225280]{0}', space=vmem, size = 0x37000, scoped, tag = 'input window, operand 1, single buffered']
    #allocation3 [shape = 's32[2]{0}', space=sflag, size = 0x8, scoped, tag = 'scoped memory for mmaavinet_forward.1']
    %8 = vsyncpa [#allocation3], 0
    loop: start=0, step=1, limit=4
    $region2: #{mmaavinet_forward.1} parent=1 // loop_pre_header
      _
    $region3: #{mmaavinet_forward.1} parent=1 // loop_header
      %s10 = sphi 0, %s14
      %p11 = scmp.ge.s32.totalorder %s10, 4
      %s20 = sphi 0, %s22
      %s23 = sphi 0, %s20
      %s24 = sphi 0, %s23
      %s40 = sphi 0, %s24
      %s44 = sphi 0, %s44
      %s46 = sphi 0, %s44
      %s47 = sphi 0, %s46
      %s61 = sphi 0, %s47
      %s65 = sphi 0, %s65
      %s67 = sphi 0, %s65
      %s68 = sphi 0, %s67
      %s82 = sphi 0, %s68
      %s88 = sphi 0, %s90
      %s91 = sphi 0, %s88
      %s92 = sphi 0, %s91
      %s108 = sphi 0, %s92
    $region4: #{mmaavinet_forward.1} parent=1 // loop_header_branch
      %13 = sbr.rel (%p11) target = $region8
    $region5: #{mmaavinet_forward.1} parent=1 // loop_body
      %s15 = ssub.s32 %s10, 1
      %s16 = ssub.s32 %s10, 2
      %s17 = sadd.s32 %s10, 1
      %s18 = ssub.s32 %s10, %s17
      %p19 = scmp.eq.s32.totalorder %s18, 0
      %s21 = sadd.s32 %s20, 1
      %s22 = scalar_select %p19, %s20, %s21
      %p25 = pneg %p19
      %p26 = scmp.eq.s32.totalorder %s10, 1
      %p27 = por %p25, %p26
      %p28 = scmp.ne.s32.totalorder %s20, %s23
      %p29 = scmp.eq.s32.totalorder %s10, 0
      %p30 = por %p28, %p29
      %p31 = scmp.ne.s32.totalorder %s20, %s23
      %p32 = scmp.eq.s32.totalorder %s15, 1
      %p33 = por %p31, %p32
      %p34 = scmp.ne.s32.totalorder %s23, %s24
      %p35 = scmp.eq.s32.totalorder %s15, 0
      %p36 = por %p34, %p35
      %p37 = scmp.ne.s32.totalorder %s23, %s24
      %p38 = scmp.eq.s32.totalorder %s16, 1
      %p39 = por %p37, %p38
      %p41 = scmp.ne.s32.totalorder %s24, %s40
      %p42 = scmp.eq.s32.totalorder %s16, 0
      %p43 = por %p41, %p42
      %s45 = sadd.s32 %s44, 1
      %p48 = scmp.eq.s32.totalorder %s10, 1
      %p49 = scmp.ne.s32.totalorder %s44, %s46
      %p50 = scmp.eq.s32.totalorder %s10, 0
      %p51 = por %p49, %p50
      %p52 = scmp.ne.s32.totalorder %s44, %s46
      %p53 = scmp.eq.s32.totalorder %s15, 1
      %p54 = por %p52, %p53
      %p55 = scmp.ne.s32.totalorder %s46, %s47
      %p56 = scmp.eq.s32.totalorder %s15, 0
      %p57 = por %p55, %p56
      %p58 = scmp.ne.s32.totalorder %s46, %s47
      %p59 = scmp.eq.s32.totalorder %s16, 1
      %p60 = por %p58, %p59
      %p62 = scmp.ne.s32.totalorder %s47, %s61
      %p63 = scmp.eq.s32.totalorder %s16, 0
      %p64 = por %p62, %p63
      %s66 = sadd.s32 %s65, 1
      %p69 = scmp.eq.s32.totalorder %s10, 1
      %p70 = scmp.ne.s32.totalorder %s65, %s67
      %p71 = scmp.eq.s32.totalorder %s10, 0
      %p72 = por %p70, %p71
      %p73 = scmp.ne.s32.totalorder %s65, %s67
      %p74 = scmp.eq.s32.totalorder %s15, 1
      %p75 = por %p73, %p74
      %p76 = scmp.ne.s32.totalorder %s67, %s68
      %p77 = scmp.eq.s32.totalorder %s15, 0
      %p78 = por %p76, %p77
      %p79 = scmp.ne.s32.totalorder %s67, %s68
      %p80 = scmp.eq.s32.totalorder %s16, 1
      %p81 = por %p79, %p80
      %p83 = scmp.ne.s32.totalorder %s68, %s82
      %p84 = scmp.eq.s32.totalorder %s16, 0
      %p85 = por %p83, %p84
      %s86 = ssub.s32 %s10, %s17
      %p87 = scmp.eq.s32.totalorder %s86, 0
      %s89 = sadd.s32 %s88, 1
      %s90 = scalar_select %p87, %s88, %s89
      %p93 = pneg %p87
      %p94 = scmp.eq.s32.totalorder %s10, 1
      %p95 = por %p93, %p94
      %p96 = scmp.ne.s32.totalorder %s88, %s91
      %p97 = scmp.eq.s32.totalorder %s10, 0
      %p98 = por %p96, %p97
      %p99 = scmp.ne.s32.totalorder %s88, %s91
      %p100 = scmp.eq.s32.totalorder %s15, 1
      %p101 = por %p99, %p100
      %p102 = scmp.ne.s32.totalorder %s91, %s92
      %p103 = scmp.eq.s32.totalorder %s15, 0
      %p104 = por %p102, %p103
      %p105 = scmp.ne.s32.totalorder %s91, %s92
      %p106 = scmp.eq.s32.totalorder %s16, 1
      %p107 = por %p105, %p106
      %p109 = scmp.ne.s32.totalorder %s92, %s108
      %p110 = scmp.eq.s32.totalorder %s16, 0
      %p111 = por %p109, %p110
      %p112 = scmp.le.s32.totalorder 1, %s10
      %p113 = scmp.lt.s32.totalorder %s10, 3
      %p114 = pnand %p112, %p113
      %p115 = pneg %p114
      // Predicated region
      $region9: #{mmaavinet_forward.1} parent=5 // pred_check
        _
      $region10: #{mmaavinet_forward.1} parent=5 // pred_check_branch
        %117 = sbr.rel (%p114) target = $region12
      $region11: #{mmaavinet_forward.1} parent=5 // pred_region
        %s118 = ssub.s32 %s10, 1
        // Predicated region
        $region13: #{mmaavinet_forward.1} parent=11 // pred_check
          %p119 = pneg %p57
        $region14: #{mmaavinet_forward.1} parent=11 // pred_check_branch
          %121 = sbr.rel (%p119) target = $region16
        $region15: #{mmaavinet_forward.1} parent=11 // pred_region
          %s123 = ssub.s32 7040, 7040
          %124 = vsyncadd [#allocation3], %s123
          %s125 = sshll.u32 [#allocation2], 4
          %s126 = int_to_ptr.vmem [resolvable:$true] %s125
          %131 = dma.hbm_to_vmem [thread:$0]  %s1, 7040, %s126, [#allocation3], 128, 128, 8
        $region16: #{mmaavinet_forward.1} parent=11 // pred_fallthru
          _
        // Predicated region
        $region17: #{mmaavinet_forward.1} parent=11 // pred_check
          %p132 = pneg %p78
        $region18: #{mmaavinet_forward.1} parent=11 // pred_check_branch
          %134 = sbr.rel (%p132) target = $region20
        $region19: #{mmaavinet_forward.1} parent=11 // pred_region
          _
        $region20: #{mmaavinet_forward.1} parent=11 // pred_fallthru
          _
      $region12: #{mmaavinet_forward.1} parent=5 // pred_fallthru
        _
      %p135 = scmp.lt.s32.totalorder %s10, 2
      // Predicated region
      $region21: #{mmaavinet_forward.1} parent=5 // pred_check
        %p136 = pneg %p135
      $region22: #{mmaavinet_forward.1} parent=5 // pred_check_branch
        %138 = sbr.rel (%p136) target = $region24
      $region23: #{mmaavinet_forward.1} parent=5 // pred_region
        // Predicated region
        $region25: #{mmaavinet_forward.1} parent=23 // pred_check
          %p139 = pneg %p30
        $region26: #{mmaavinet_forward.1} parent=23 // pred_check_branch
          %141 = sbr.rel (%p139) target = $region28
        $region27: #{mmaavinet_forward.1} parent=23 // pred_region
          %p142 = scmp.lt.s32.totalorder %s10, 1
          %s143 = scalar_select %p142, %s10, 1
          %s144 = smul.addr %s143, 8
          %s145 = scalar_lea.vmem %s0, %s144
        $region28: #{mmaavinet_forward.1} parent=23 // pred_fallthru
          _
      $region24: #{mmaavinet_forward.1} parent=5 // pred_fallthru
        _
      %p146 = scmp.le.s32.totalorder 1, %s10
      %p147 = scmp.lt.s32.totalorder %s10, 3
      %p148 = pnand %p146, %p147
      %p149 = pneg %p148
      // Predicated region
      $region29: #{mmaavinet_forward.1} parent=5 // pred_check
        _
      $region30: #{mmaavinet_forward.1} parent=5 // pred_check_branch
        %151 = sbr.rel (%p148) target = $region32
      $region31: #{mmaavinet_forward.1} parent=5 // pred_region
        %s152 = ssub.s32 %s10, 1
        // Predicated region
        $region33: #{mmaavinet_forward.1} parent=31 // pred_check
          %p153 = pneg %p57
        $region34: #{mmaavinet_forward.1} parent=31 // pred_check_branch
          %155 = sbr.rel (%p153) target = $region36
        $region35: #{mmaavinet_forward.1} parent=31 // pred_region
          %156 = dma.done [#allocation3], 7040
        $region36: #{mmaavinet_forward.1} parent=31 // pred_fallthru
          _
        %p157 = scmp.lt.s32.totalorder %s15, 1
        %s158 = scalar_select %p157, %s15, 1
        %s159 = smul.addr %s158, 8
        %s160 = scalar_lea.vmem %s0, %s159
        %p161 = pneg %p36
        %p162 = pneg %p33
        %p163 = pneg %p57
        %p164 = pneg %p54
        %p165 = pneg %p78
        %p166 = pneg %p75
        %p167 = pneg %p104
        %p168 = pneg %p101
        %p169 = scmp.lt.s32.totalorder %s15, 1
        %s170 = scalar_select %p169, %s15, 1
        %s171 = smul.addr %s170, 8
        %s172 = scalar_lea.vmem %s3, %s171
        %p173 = scmp.lt.s32.totalorder %s15, 1
        %s174 = scalar_select %p173, %s15, 1
        %s175 = smul.addr %s174, 8
        %s176 = scalar_lea.vmem %s0, %s175
        %p177 = scmp.lt.s32.totalorder %s15, 1
        %s178 = scalar_select %p177, %s15, 1
        %s179 = smul.addr %s178, 8
        %s180 = scalar_lea.vmem %s3, %s179
        %v181 = vld [vmem:[%s176] sm:$0xff]
        %v182 = vld [vmem:[#allocation2] sm:$0xff]
        %v183 = vld [vmem:[#allocation2 + $0x8] sm:$0xff]
        %v184 = vld [vmem:[#allocation2 + $0x10] sm:$0xff]
        %v185 = vld [vmem:[#allocation2 + $0x18] sm:$0xff]
        %v186 = vld [vmem:[#allocation2 + $0x20] sm:$0xff]
        %v187 = vld [vmem:[#allocation2 + $0x28] sm:$0xff]
        %v188 = vld [vmem:[#allocation2 + $0x30] sm:$0xff]
        %v189 = vld [vmem:[#allocation2 + $0x38] sm:$0xff]
        %v190 = vld [vmem:[#allocation2 + $0x40] sm:$0xff]
        %v191 = vld [vmem:[#allocation2 + $0x48] sm:$0xff]
        %v192 = vld [vmem:[#allocation2 + $0x50] sm:$0xff]
        %v193 = vld [vmem:[#allocation2 + $0x58] sm:$0xff]
        %v194 = vld [vmem:[#allocation2 + $0x60] sm:$0xff]
        %v195 = vld [vmem:[#allocation2 + $0x68] sm:$0xff]
        %v196 = vld [vmem:[%s2] sm:$0x1]
        %v197 = vlaneseq
        %v198 = vshrl.u32 %v197, 7
        %v199 = vsub.s32 0, %v198
        %v200 = vrot.slane %v196, %v199
        %vm201 = vcmask 916480
        %v203 = vsel %vm201, %v181, 0
        %205 = vmatprep.subr.mxu0 0.0
        %206 = vmatpush1.msra.mxu0 %v182
        %207 = vmatprep.subr.mxu0 0.0
        %208 = vmatpush1.msra.mxu0 %v183
        %209 = vmatprep.subr.mxu0 0.0
        %210 = vmatpush1.msra.mxu0 %v184
        %211 = vmatprep.subr.mxu0 0.0
        %212 = vmatpush1.msra.mxu0 %v185
        %213 = vmatprep.subr.mxu0 0.0
        %214 = vmatpush1.msra.mxu0 %v186
        %215 = vmatprep.subr.mxu0 0.0
        %216 = vmatpush1.msra.mxu0 %v187
        %217 = vmatprep.subr.mxu0 0.0
        %218 = vmatpush1.msra.mxu0 %v188
        %219 = vmatprep.subr.mxu0 0.0
        %220 = vmatpush1.msra.mxu0 %v189
        %221 = vmatprep.subr.mxu0 0.0
        %222 = vmatpush1.msra.mxu0 %v190
        %223 = vmatprep.subr.mxu0 0.0
        %224 = vmatpush1.msra.mxu0 %v191
        %225 = vmatprep.subr.mxu0 0.0
        %226 = vmatpush1.msra.mxu0 %v192
        %227 = vmatprep.subr.mxu0 0.0
        %228 = vmatpush1.msra.mxu0 %v193
        %229 = vmatprep.subr.mxu0 0.0
        %230 = vmatpush1.msra.mxu0 %v194
        %231 = vmatprep.subr.mxu0 0.0
        %232 = vmatpush1.msra.mxu0 %v195
        %233 = vmatprep.subr.mxu0 0.0
        %234 = vmatpush1.msra.mxu0 0.0
        %235 = vmatprep.subr.mxu0 0.0
        %236 = vmatpush1.msra.mxu0 0.0
        %237 = vmatprep.subr.mxu0 0.0
        %238 = vmatpush1.msra.mxu0 0.0
        %239 = vmatprep.subr.mxu0 0.0
        %240 = vmatpush1.msra.mxu0 0.0
        %241 = vmatprep.subr.mxu0 0.0
        %242 = vmatpush1.msra.mxu0 0.0
        %243 = vmatprep.subr.mxu0 0.0
        %244 = vmatpush1.msra.mxu0 0.0
        %245 = vmatprep.subr.mxu0 0.0
        %246 = vmatpush1.msra.mxu0 0.0
        %247 = vmatprep.subr.mxu0 0.0
        %248 = vmatpush1.msra.mxu0 0.0
        %249 = vmatprep.subr.mxu0 0.0
        %250 = vmatpush1.msra.mxu0 0.0
        %251 = vmatprep.subr.mxu0 0.0
        %252 = vmatpush1.msra.mxu0 0.0
        %253 = vmatprep.subr.mxu0 0.0
        %254 = vmatpush1.msra.mxu0 0.0
        %255 = vmatprep.subr.mxu0 0.0
        %256 = vmatpush1.msra.mxu0 0.0
        %257 = vmatprep.subr.mxu0 0.0
        %258 = vmatpush1.msra.mxu0 0.0
        %259 = vmatprep.subr.mxu0 0.0
        %260 = vmatpush1.msra.mxu0 0.0
        %261 = vmatprep.subr.mxu0 0.0
        %262 = vmatpush1.msra.mxu0 0.0
        %263 = vmatprep.subr.mxu0 0.0
        %264 = vmatpush1.msra.mxu0 0.0
        %265 = vmatprep.subr.mxu0 0.0
        %266 = vmatpush1.msra.mxu0 0.0
        %267 = vmatprep.subr.mxu0 0.0
        %268 = vmatpush1.msra.mxu0 0.0
        %269 = vmatprep.mubr.f32.mxu0 0.0
        %270 = vmatmul.mubr.f32.gmra.mrb[0].mxu0 %v203
        %v271 = vpop.f32.mrb[0].mxu0
        %v272 = vadd.f32 %v200, %v271
        %v273 = vpop.f32.mrb[0].mxu0
        %274 = vdwg.mxu0
        %vm275 = vcmp.ge.f32.partialorder %v272, 0.0
        %v276 = vmul.f32 %v272, 0.2
        %v277 = vsel %vm275, %v272, %v276
        %v278 = vld [vmem:[#allocation2 + $0x70] sm:$0xff]
        %v279 = vld [vmem:[#allocation2 + $0x78] sm:$0xff]
        %v280 = vld [vmem:[#allocation2 + $0x80] sm:$0xff]
        %v281 = vld [vmem:[#allocation2 + $0x88] sm:$0xff]
        %v282 = vld [vmem:[#allocation2 + $0x90] sm:$0xff]
        %v283 = vld [vmem:[#allocation2 + $0x98] sm:$0xff]
        %v284 = vld [vmem:[#allocation2 + $0xa0] sm:$0xff]
        %v285 = vld [vmem:[#allocation2 + $0xa8] sm:$0xff]
        %v286 = vld [vmem:[%s2 + $0x1] sm:$0x1]
        %v287 = vlaneseq
        %v288 = vshrl.u32 %v287, 7
        %v289 = vsub.s32 0, %v288
        %v290 = vrot.slane %v286, %v289
        %vm291 = vcmask 523264
        %v293 = vsel %vm291, %v277, 0
        %295 = vmatprep.subr.mxu0 0.0
        %296 = vmatpush1.msra.mxu0 %v278
        %297 = vmatprep.subr.mxu0 0.0
        %298 = vmatpush1.msra.mxu0 %v279
        %299 = vmatprep.subr.mxu0 0.0
        %300 = vmatpush1.msra.mxu0 %v280
        %301 = vmatprep.subr.mxu0 0.0
        %302 = vmatpush1.msra.mxu0 %v281
        %303 = vmatprep.subr.mxu0 0.0
        %304 = vmatpush1.msra.mxu0 %v282
        %305 = vmatprep.subr.mxu0 0.0
        %306 = vmatpush1.msra.mxu0 %v283
        %307 = vmatprep.subr.mxu0 0.0
        %308 = vmatpush1.msra.mxu0 %v284
        %309 = vmatprep.subr.mxu0 0.0
        %310 = vmatpush1.msra.mxu0 %v285
        %311 = vmatprep.subr.mxu0 0.0
        %312 = vmatpush1.msra.mxu0 0.0
        %313 = vmatprep.subr.mxu0 0.0
        %314 = vmatpush1.msra.mxu0 0.0
        %315 = vmatprep.subr.mxu0 0.0
        %316 = vmatpush1.msra.mxu0 0.0
        %317 = vmatprep.subr.mxu0 0.0
        %318 = vmatpush1.msra.mxu0 0.0
        %319 = vmatprep.subr.mxu0 0.0
        %320 = vmatpush1.msra.mxu0 0.0
        %321 = vmatprep.subr.mxu0 0.0
        %322 = vmatpush1.msra.mxu0 0.0
        %323 = vmatprep.subr.mxu0 0.0
        %324 = vmatpush1.msra.mxu0 0.0
        %325 = vmatprep.subr.mxu0 0.0
        %326 = vmatpush1.msra.mxu0 0.0
        %327 = vmatprep.subr.mxu0 0.0
        %328 = vmatpush1.msra.mxu0 0.0
        %329 = vmatprep.subr.mxu0 0.0
        %330 = vmatpush1.msra.mxu0 0.0
        %331 = vmatprep.subr.mxu0 0.0
        %332 = vmatpush1.msra.mxu0 0.0
        %333 = vmatprep.subr.mxu0 0.0
        %334 = vmatpush1.msra.mxu0 0.0
        %335 = vmatprep.subr.mxu0 0.0
        %336 = vmatpush1.msra.mxu0 0.0
        %337 = vmatprep.subr.mxu0 0.0
        %338 = vmatpush1.msra.mxu0 0.0
        %339 = vmatprep.subr.mxu0 0.0
        %340 = vmatpush1.msra.mxu0 0.0
        %341 = vmatprep.subr.mxu0 0.0
        %342 = vmatpush1.msra.mxu0 0.0
        %343 = vmatprep.subr.mxu0 0.0
        %344 = vmatpush1.msra.mxu0 0.0
        %345 = vmatprep.subr.mxu0 0.0
        %346 = vmatpush1.msra.mxu0 0.0
        %347 = vmatprep.subr.mxu0 0.0
        %348 = vmatpush1.msra.mxu0 0.0
        %349 = vmatprep.subr.mxu0 0.0
        %350 = vmatpush1.msra.mxu0 0.0
        %351 = vmatprep.subr.mxu0 0.0
        %352 = vmatpush1.msra.mxu0 0.0
        %353 = vmatprep.subr.mxu0 0.0
        %354 = vmatpush1.msra.mxu0 0.0
        %355 = vmatprep.subr.mxu0 0.0
        %356 = vmatpush1.msra.mxu0 0.0
        %357 = vmatprep.subr.mxu0 0.0
        %358 = vmatpush1.msra.mxu0 0.0
        %359 = vmatprep.mubr.f32.mxu0 0.0
        %360 = vmatmul.mubr.f32.gmra.mrb[0].mxu0 %v293
        %v361 = vpop.f32.mrb[0].mxu0
        %v362 = vadd.f32 %v290, %v361
        %v363 = vpop.f32.mrb[0].mxu0
        %364 = vdwg.mxu0
        %vm365 = vcmp.ge.f32.partialorder %v362, 0.0
        %v366 = vmul.f32 %v362, 0.2
        %v367 = vsel %vm365, %v362, %v366
        %v368 = vld [vmem:[#allocation2 + $0xb0] sm:$0xff]
        %v369 = vld [vmem:[#allocation2 + $0xb8] sm:$0xff]
        %v370 = vld [vmem:[#allocation2 + $0xc0] sm:$0xff]
        %v371 = vld [vmem:[#allocation2 + $0xc8] sm:$0xff]
        %v372 = vld [vmem:[#allocation2 + $0xd0] sm:$0xff]
        %v373 = vld [vmem:[#allocation2 + $0xd8] sm:$0xff]
        %v374 = vld [vmem:[#allocation2 + $0xe0] sm:$0xff]
        %v375 = vld [vmem:[#allocation2 + $0xe8] sm:$0xff]
        %v376 = vld [vmem:[%s2 + $0x2] sm:$0x1]
        %v377 = vlaneseq
        %v378 = vshrl.u32 %v377, 7
        %v379 = vsub.s32 0, %v378
        %v380 = vrot.slane %v376, %v379
        %v382 = vsel %vm291, %v367, 0
        %384 = vmatprep.subr.mxu0 0.0
        %385 = vmatpush1.msra.mxu0 %v368
        %386 = vmatprep.subr.mxu0 0.0
        %387 = vmatpush1.msra.mxu0 %v369
        %388 = vmatprep.subr.mxu0 0.0
        %389 = vmatpush1.msra.mxu0 %v370
        %390 = vmatprep.subr.mxu0 0.0
        %391 = vmatpush1.msra.mxu0 %v371
        %392 = vmatprep.subr.mxu0 0.0
        %393 = vmatpush1.msra.mxu0 %v372
        %394 = vmatprep.subr.mxu0 0.0
        %395 = vmatpush1.msra.mxu0 %v373
        %396 = vmatprep.subr.mxu0 0.0
        %397 = vmatpush1.msra.mxu0 %v374
        %398 = vmatprep.subr.mxu0 0.0
        %399 = vmatpush1.msra.mxu0 %v375
        %400 = vmatprep.subr.mxu0 0.0
        %401 = vmatpush1.msra.mxu0 0.0
        %402 = vmatprep.subr.mxu0 0.0
        %403 = vmatpush1.msra.mxu0 0.0
        %404 = vmatprep.subr.mxu0 0.0
        %405 = vmatpush1.msra.mxu0 0.0
        %406 = vmatprep.subr.mxu0 0.0
        %407 = vmatpush1.msra.mxu0 0.0
        %408 = vmatprep.subr.mxu0 0.0
        %409 = vmatpush1.msra.mxu0 0.0
        %410 = vmatprep.subr.mxu0 0.0
        %411 = vmatpush1.msra.mxu0 0.0
        %412 = vmatprep.subr.mxu0 0.0
        %413 = vmatpush1.msra.mxu0 0.0
        %414 = vmatprep.subr.mxu0 0.0
        %415 = vmatpush1.msra.mxu0 0.0
        %416 = vmatprep.subr.mxu0 0.0
        %417 = vmatpush1.msra.mxu0 0.0
        %418 = vmatprep.subr.mxu0 0.0
        %419 = vmatpush1.msra.mxu0 0.0
        %420 = vmatprep.subr.mxu0 0.0
        %421 = vmatpush1.msra.mxu0 0.0
        %422 = vmatprep.subr.mxu0 0.0
        %423 = vmatpush1.msra.mxu0 0.0
        %424 = vmatprep.subr.mxu0 0.0
        %425 = vmatpush1.msra.mxu0 0.0
        %426 = vmatprep.subr.mxu0 0.0
        %427 = vmatpush1.msra.mxu0 0.0
        %428 = vmatprep.subr.mxu0 0.0
        %429 = vmatpush1.msra.mxu0 0.0
        %430 = vmatprep.subr.mxu0 0.0
        %431 = vmatpush1.msra.mxu0 0.0
        %432 = vmatprep.subr.mxu0 0.0
        %433 = vmatpush1.msra.mxu0 0.0
        %434 = vmatprep.subr.mxu0 0.0
        %435 = vmatpush1.msra.mxu0 0.0
        %436 = vmatprep.subr.mxu0 0.0
        %437 = vmatpush1.msra.mxu0 0.0
        %438 = vmatprep.subr.mxu0 0.0
        %439 = vmatpush1.msra.mxu0 0.0
        %440 = vmatprep.subr.mxu0 0.0
        %441 = vmatpush1.msra.mxu0 0.0
        %442 = vmatprep.subr.mxu0 0.0
        %443 = vmatpush1.msra.mxu0 0.0
        %444 = vmatprep.subr.mxu0 0.0
        %445 = vmatpush1.msra.mxu0 0.0
        %446 = vmatprep.subr.mxu0 0.0
        %447 = vmatpush1.msra.mxu0 0.0
        %448 = vmatprep.mubr.f32.mxu0 0.0
        %449 = vmatmul.mubr.f32.gmra.mrb[0].mxu0 %v382
        %v450 = vpop.f32.mrb[0].mxu0
        %v451 = vadd.f32 %v380, %v450
        %v452 = vpop.f32.mrb[0].mxu0
        %453 = vdwg.mxu0
        %vm454 = vcmp.ge.f32.partialorder %v451, 0.0
        %v455 = vmul.f32 %v451, 0.2
        %v456 = vsel %vm454, %v451, %v455
        %v457 = vld [vmem:[#allocation2 + $0xf0] sm:$0xff]
        %v458 = vld [vmem:[#allocation2 + $0xf8] sm:$0xff]
        %v459 = vld [vmem:[#allocation2 + $0x100] sm:$0xff]
        %v460 = vld [vmem:[#allocation2 + $0x108] sm:$0xff]
        %v461 = vld [vmem:[#allocation2 + $0x110] sm:$0xff]
        %v462 = vld [vmem:[#allocation2 + $0x118] sm:$0xff]
        %v463 = vld [vmem:[#allocation2 + $0x120] sm:$0xff]
        %v464 = vld [vmem:[#allocation2 + $0x128] sm:$0xff]
        %v465 = vld [vmem:[%s2 + $0x3] sm:$0x1]
        %v466 = vlaneseq
        %v467 = vshrl.u32 %v466, 7
        %v468 = vsub.s32 0, %v467
        %v469 = vrot.slane %v465, %v468
        %v471 = vsel %vm291, %v456, 0
        %473 = vmatprep.subr.mxu0 0.0
        %474 = vmatpush1.msra.mxu0 %v457
        %475 = vmatprep.subr.mxu0 0.0
        %476 = vmatpush1.msra.mxu0 %v458
        %477 = vmatprep.subr.mxu0 0.0
        %478 = vmatpush1.msra.mxu0 %v459
        %479 = vmatprep.subr.mxu0 0.0
        %480 = vmatpush1.msra.mxu0 %v460
        %481 = vmatprep.subr.mxu0 0.0
        %482 = vmatpush1.msra.mxu0 %v461
        %483 = vmatprep.subr.mxu0 0.0
        %484 = vmatpush1.msra.mxu0 %v462
        %485 = vmatprep.subr.mxu0 0.0
        %486 = vmatpush1.msra.mxu0 %v463
        %487 = vmatprep.subr.mxu0 0.0
        %488 = vmatpush1.msra.mxu0 %v464
        %489 = vmatprep.subr.mxu0 0.0
        %490 = vmatpush1.msra.mxu0 0.0
        %491 = vmatprep.subr.mxu0 0.0
        %492 = vmatpush1.msra.mxu0 0.0
        %493 = vmatprep.subr.mxu0 0.0
        %494 = vmatpush1.msra.mxu0 0.0
        %495 = vmatprep.subr.mxu0 0.0
        %496 = vmatpush1.msra.mxu0 0.0
        %497 = vmatprep.subr.mxu0 0.0
        %498 = vmatpush1.msra.mxu0 0.0
        %499 = vmatprep.subr.mxu0 0.0
        %500 = vmatpush1.msra.mxu0 0.0
        %501 = vmatprep.subr.mxu0 0.0
        %502 = vmatpush1.msra.mxu0 0.0
        %503 = vmatprep.subr.mxu0 0.0
        %504 = vmatpush1.msra.mxu0 0.0
        %505 = vmatprep.subr.mxu0 0.0
        %506 = vmatpush1.msra.mxu0 0.0
        %507 = vmatprep.subr.mxu0 0.0
        %508 = vmatpush1.msra.mxu0 0.0
        %509 = vmatprep.subr.mxu0 0.0
        %510 = vmatpush1.msra.mxu0 0.0
        %511 = vmatprep.subr.mxu0 0.0
        %512 = vmatpush1.msra.mxu0 0.0
        %513 = vmatprep.subr.mxu0 0.0
        %514 = vmatpush1.msra.mxu0 0.0
        %515 = vmatprep.subr.mxu0 0.0
        %516 = vmatpush1.msra.mxu0 0.0
        %517 = vmatprep.subr.mxu0 0.0
        %518 = vmatpush1.msra.mxu0 0.0
        %519 = vmatprep.subr.mxu0 0.0
        %520 = vmatpush1.msra.mxu0 0.0
        %521 = vmatprep.subr.mxu0 0.0
        %522 = vmatpush1.msra.mxu0 0.0
        %523 = vmatprep.subr.mxu0 0.0
        %524 = vmatpush1.msra.mxu0 0.0
        %525 = vmatprep.subr.mxu0 0.0
        %526 = vmatpush1.msra.mxu0 0.0
        %527 = vmatprep.subr.mxu0 0.0
        %528 = vmatpush1.msra.mxu0 0.0
        %529 = vmatprep.subr.mxu0 0.0
        %530 = vmatpush1.msra.mxu0 0.0
        %531 = vmatprep.subr.mxu0 0.0
        %532 = vmatpush1.msra.mxu0 0.0
        %533 = vmatprep.subr.mxu0 0.0
        %534 = vmatpush1.msra.mxu0 0.0
        %535 = vmatprep.subr.mxu0 0.0
        %536 = vmatpush1.msra.mxu0 0.0
        %537 = vmatprep.mubr.f32.mxu0 0.0
        %538 = vmatmul.mubr.f32.gmra.mrb[0].mxu0 %v471
        %v539 = vpop.f32.mrb[0].mxu0
        %v540 = vadd.f32 %v469, %v539
        %v541 = vpop.f32.mrb[0].mxu0
        %542 = vdwg.mxu0
        %vm543 = vcmp.gt.f32.partialorder %v181, 0.0
        %545 = vrot.lane.b32.xlu0 %v540, 112
        %v546 = vpop.permute.xlu0 %545
        %v548 = vsel %vm543, %v546, -1e+30
        %vm549 = vcmask 933760
        %v550 = vsel %vm549, %v548, -inf
        %551 = vmax.xlane.f32.xlu0 %v550
        %v552 = vpop.xlane.xlu0 %551
        %v553 = vsub.f32 %v548, %v552
        %v554 = vmul.f32 %v553, 1.442695
        %v555 = vpow.pop %v554
        %v556 = vmul.f32 %v555, %v181
        %558 = vrot.lane.b32.xlu0 %v556, 16
        %v559 = vpop.permute.xlu0 %558
        %vm561 = vcmask 15360
        %v562 = vsel %vm561, %v559, 0.0
        %563 = vadd.xlane.f32.xlu0 %v562
        %v564 = vpop.xlane.xlu0 %563
        %v565 = vadd.f32 %v564, 1e-12
        %v566 = vrcp.pop %v565
        %v567 = vmul.f32 %v565, %v566
        %v568 = vsub.f32 2.0, %v567
        %v569 = vmul.f32 %v566, %v568
        %v570 = vmul.f32 %v556, %v569
        %572 = vset.pattern.permute.xlu0 112
        %573 = vperm.xlu0 %572, %v570
        %v574 = vpop.permute.xlu0 %573
        %v576 = vmul.f32 %v574, %v456
        %577 = vset.pattern.permute.xlu0 113
        %578 = vperm.xlu0 %577, %v570
        %v579 = vpop.permute.xlu0 %578
        %v581 = vmul.f32 %v579, %v456
        %583 = vrot.lane.b32.xlu0 %v581, 96
        %v584 = vpop.permute.xlu0 %583
        %v586 = vadd.f32 %v576, %v584
        %v587 = vld [vmem:[#allocation2 + $0x130] sm:$0xff]
        %v588 = vld [vmem:[#allocation2 + $0x138] sm:$0xff]
        %v589 = vld [vmem:[#allocation2 + $0x140] sm:$0xff]
        %v590 = vld [vmem:[#allocation2 + $0x148] sm:$0xff]
        %v591 = vld [vmem:[%s2 + $0x4] sm:$0x1]
        %v592 = vlaneseq
        %v593 = vshrl.u32 %v592, 7
        %v594 = vsub.s32 0, %v593
        %v595 = vrot.slane %v591, %v594
        %vm596 = vcmask 261120
        %v598 = vsel %vm596, %v586, 0
        %600 = vmatprep.subr.mxu0 0.0
        %601 = vmatpush1.msra.mxu0 %v587
        %602 = vmatprep.subr.mxu0 0.0
        %603 = vmatpush1.msra.mxu0 %v588
        %604 = vmatprep.subr.mxu0 0.0
        %605 = vmatpush1.msra.mxu0 %v589
        %606 = vmatprep.subr.mxu0 0.0
        %607 = vmatpush1.msra.mxu0 %v590
        %608 = vmatprep.subr.mxu0 0.0
        %609 = vmatpush1.msra.mxu0 0.0
        %610 = vmatprep.subr.mxu0 0.0
        %611 = vmatpush1.msra.mxu0 0.0
        %612 = vmatprep.subr.mxu0 0.0
        %613 = vmatpush1.msra.mxu0 0.0
        %614 = vmatprep.subr.mxu0 0.0
        %615 = vmatpush1.msra.mxu0 0.0
        %616 = vmatprep.subr.mxu0 0.0
        %617 = vmatpush1.msra.mxu0 0.0
        %618 = vmatprep.subr.mxu0 0.0
        %619 = vmatpush1.msra.mxu0 0.0
        %620 = vmatprep.subr.mxu0 0.0
        %621 = vmatpush1.msra.mxu0 0.0
        %622 = vmatprep.subr.mxu0 0.0
        %623 = vmatpush1.msra.mxu0 0.0
        %624 = vmatprep.subr.mxu0 0.0
        %625 = vmatpush1.msra.mxu0 0.0
        %626 = vmatprep.subr.mxu0 0.0
        %627 = vmatpush1.msra.mxu0 0.0
        %628 = vmatprep.subr.mxu0 0.0
        %629 = vmatpush1.msra.mxu0 0.0
        %630 = vmatprep.subr.mxu0 0.0
        %631 = vmatpush1.msra.mxu0 0.0
        %632 = vmatprep.subr.mxu0 0.0
        %633 = vmatpush1.msra.mxu0 0.0
        %634 = vmatprep.subr.mxu0 0.0
        %635 = vmatpush1.msra.mxu0 0.0
        %636 = vmatprep.subr.mxu0 0.0
        %637 = vmatpush1.msra.mxu0 0.0
        %638 = vmatprep.subr.mxu0 0.0
        %639 = vmatpush1.msra.mxu0 0.0
        %640 = vmatprep.subr.mxu0 0.0
        %641 = vmatpush1.msra.mxu0 0.0
        %642 = vmatprep.subr.mxu0 0.0
        %643 = vmatpush1.msra.mxu0 0.0
        %644 = vmatprep.subr.mxu0 0.0
        %645 = vmatpush1.msra.mxu0 0.0
        %646 = vmatprep.subr.mxu0 0.0
        %647 = vmatpush1.msra.mxu0 0.0
        %648 = vmatprep.subr.mxu0 0.0
        %649 = vmatpush1.msra.mxu0 0.0
        %650 = vmatprep.subr.mxu0 0.0
        %651 = vmatpush1.msra.mxu0 0.0
        %652 = vmatprep.subr.mxu0 0.0
        %653 = vmatpush1.msra.mxu0 0.0
        %654 = vmatprep.subr.mxu0 0.0
        %655 = vmatpush1.msra.mxu0 0.0
        %656 = vmatprep.subr.mxu0 0.0
        %657 = vmatpush1.msra.mxu0 0.0
        %658 = vmatprep.subr.mxu0 0.0
        %659 = vmatpush1.msra.mxu0 0.0
        %660 = vmatprep.subr.mxu0 0.0
        %661 = vmatpush1.msra.mxu0 0.0
        %662 = vmatprep.subr.mxu0 0.0
        %663 = vmatpush1.msra.mxu0 0.0
        %664 = vmatprep.mubr.f32.mxu0 0.0
        %665 = vmatmul.mubr.f32.gmra.mrb[0].mxu0 %v598
        %v666 = vpop.f32.mrb[0].mxu0
        %v667 = vadd.f32 %v595, %v666
        %v668 = vpop.f32.mrb[0].mxu0
        %669 = vdwg.mxu0
        %vm670 = vcmp.ge.f32.partialorder %v667, 0.0
        %v671 = vmul.f32 %v667, 0.2
        %v672 = vsel %vm670, %v667, %v671
        %v673 = vld [vmem:[#allocation2 + $0x150] sm:$0xff]
        %v674 = vld [vmem:[#allocation2 + $0x158] sm:$0xff]
        %v675 = vld [vmem:[#allocation2 + $0x160] sm:$0xff]
        %v676 = vld [vmem:[#allocation2 + $0x168] sm:$0xff]
        %v677 = vld [vmem:[%s2 + $0x5] sm:$0x1]
        %v678 = vlaneseq
        %v679 = vshrl.u32 %v678, 7
        %v680 = vsub.s32 0, %v679
        %v681 = vrot.slane %v677, %v680
        %v683 = vsel %vm596, %v672, 0
        %685 = vmatprep.subr.mxu0 0.0
        %686 = vmatpush1.msra.mxu0 %v673
        %687 = vmatprep.subr.mxu0 0.0
        %688 = vmatpush1.msra.mxu0 %v674
        %689 = vmatprep.subr.mxu0 0.0
        %690 = vmatpush1.msra.mxu0 %v675
        %691 = vmatprep.subr.mxu0 0.0
        %692 = vmatpush1.msra.mxu0 %v676
        %693 = vmatprep.subr.mxu0 0.0
        %694 = vmatpush1.msra.mxu0 0.0
        %695 = vmatprep.subr.mxu0 0.0
        %696 = vmatpush1.msra.mxu0 0.0
        %697 = vmatprep.subr.mxu0 0.0
        %698 = vmatpush1.msra.mxu0 0.0
        %699 = vmatprep.subr.mxu0 0.0
        %700 = vmatpush1.msra.mxu0 0.0
        %701 = vmatprep.subr.mxu0 0.0
        %702 = vmatpush1.msra.mxu0 0.0
        %703 = vmatprep.subr.mxu0 0.0
        %704 = vmatpush1.msra.mxu0 0.0
        %705 = vmatprep.subr.mxu0 0.0
        %706 = vmatpush1.msra.mxu0 0.0
        %707 = vmatprep.subr.mxu0 0.0
        %708 = vmatpush1.msra.mxu0 0.0
        %709 = vmatprep.subr.mxu0 0.0
        %710 = vmatpush1.msra.mxu0 0.0
        %711 = vmatprep.subr.mxu0 0.0
        %712 = vmatpush1.msra.mxu0 0.0
        %713 = vmatprep.subr.mxu0 0.0
        %714 = vmatpush1.msra.mxu0 0.0
        %715 = vmatprep.subr.mxu0 0.0
        %716 = vmatpush1.msra.mxu0 0.0
        %717 = vmatprep.subr.mxu0 0.0
        %718 = vmatpush1.msra.mxu0 0.0
        %719 = vmatprep.subr.mxu0 0.0
        %720 = vmatpush1.msra.mxu0 0.0
        %721 = vmatprep.subr.mxu0 0.0
        %722 = vmatpush1.msra.mxu0 0.0
        %723 = vmatprep.subr.mxu0 0.0
        %724 = vmatpush1.msra.mxu0 0.0
        %725 = vmatprep.subr.mxu0 0.0
        %726 = vmatpush1.msra.mxu0 0.0
        %727 = vmatprep.subr.mxu0 0.0
        %728 = vmatpush1.msra.mxu0 0.0
        %729 = vmatprep.subr.mxu0 0.0
        %730 = vmatpush1.msra.mxu0 0.0
        %731 = vmatprep.subr.mxu0 0.0
        %732 = vmatpush1.msra.mxu0 0.0
        %733 = vmatprep.subr.mxu0 0.0
        %734 = vmatpush1.msra.mxu0 0.0
        %735 = vmatprep.subr.mxu0 0.0
        %736 = vmatpush1.msra.mxu0 0.0
        %737 = vmatprep.subr.mxu0 0.0
        %738 = vmatpush1.msra.mxu0 0.0
        %739 = vmatprep.subr.mxu0 0.0
        %740 = vmatpush1.msra.mxu0 0.0
        %741 = vmatprep.subr.mxu0 0.0
        %742 = vmatpush1.msra.mxu0 0.0
        %743 = vmatprep.subr.mxu0 0.0
        %744 = vmatpush1.msra.mxu0 0.0
        %745 = vmatprep.subr.mxu0 0.0
        %746 = vmatpush1.msra.mxu0 0.0
        %747 = vmatprep.subr.mxu0 0.0
        %748 = vmatpush1.msra.mxu0 0.0
        %749 = vmatprep.mubr.f32.mxu0 0.0
        %750 = vmatmul.mubr.f32.gmra.mrb[0].mxu0 %v683
        %v751 = vpop.f32.mrb[0].mxu0
        %v752 = vadd.f32 %v681, %v751
        %v753 = vpop.f32.mrb[0].mxu0
        %754 = vdwg.mxu0
        %v755 = vmax.f32 %v752, 0.0
        %v756 = vand.u32 2147483647, %v752
        %v757 = vsub.f32 0.0, %v756
        %v758 = vmul.f32 %v757, 1.442695
        %v759 = vpow.pop %v758
        %v760 = vadd.f32 %v759, 1.0
        %v761 = vlog2.pop %v760
        %v762 = vmul.f32 %v761, 0.6931472
        %v763 = vadd.f32 %v755, %v762
        %v764 = vadd.f32 %v763, 0.0001
        %v765 = vld [vmem:[#allocation2 + $0x170] sm:$0xff]
        %v766 = vld [vmem:[#allocation2 + $0x178] sm:$0xff]
        %v767 = vld [vmem:[%s2 + $0x6] sm:$0x1]
        %v768 = vlaneseq
        %v769 = vshrl.u32 %v768, 7
        %v770 = vsub.s32 0, %v769
        %v771 = vrot.slane %v767, %v770
        %vm772 = vcmask 130048
        %v774 = vsel %vm772, %v752, 0
        %776 = vmatprep.subr.mxu0 0.0
        %777 = vmatpush1.msra.mxu0 %v765
        %778 = vmatprep.subr.mxu0 0.0
        %779 = vmatpush1.msra.mxu0 %v766
        %780 = vmatprep.subr.mxu0 0.0
        %781 = vmatpush1.msra.mxu0 0.0
        %782 = vmatprep.subr.mxu0 0.0
        %783 = vmatpush1.msra.mxu0 0.0
        %784 = vmatprep.subr.mxu0 0.0
        %785 = vmatpush1.msra.mxu0 0.0
        %786 = vmatprep.subr.mxu0 0.0
        %787 = vmatpush1.msra.mxu0 0.0
        %788 = vmatprep.subr.mxu0 0.0
        %789 = vmatpush1.msra.mxu0 0.0
        %790 = vmatprep.subr.mxu0 0.0
        %791 = vmatpush1.msra.mxu0 0.0
        %792 = vmatprep.subr.mxu0 0.0
        %793 = vmatpush1.msra.mxu0 0.0
        %794 = vmatprep.subr.mxu0 0.0
        %795 = vmatpush1.msra.mxu0 0.0
        %796 = vmatprep.subr.mxu0 0.0
        %797 = vmatpush1.msra.mxu0 0.0
        %798 = vmatprep.subr.mxu0 0.0
        %799 = vmatpush1.msra.mxu0 0.0
        %800 = vmatprep.subr.mxu0 0.0
        %801 = vmatpush1.msra.mxu0 0.0
        %802 = vmatprep.subr.mxu0 0.0
        %803 = vmatpush1.msra.mxu0 0.0
        %804 = vmatprep.subr.mxu0 0.0
        %805 = vmatpush1.msra.mxu0 0.0
        %806 = vmatprep.subr.mxu0 0.0
        %807 = vmatpush1.msra.mxu0 0.0
        %808 = vmatprep.subr.mxu0 0.0
        %809 = vmatpush1.msra.mxu0 0.0
        %810 = vmatprep.subr.mxu0 0.0
        %811 = vmatpush1.msra.mxu0 0.0
        %812 = vmatprep.subr.mxu0 0.0
        %813 = vmatpush1.msra.mxu0 0.0
        %814 = vmatprep.subr.mxu0 0.0
        %815 = vmatpush1.msra.mxu0 0.0
        %816 = vmatprep.subr.mxu0 0.0
        %817 = vmatpush1.msra.mxu0 0.0
        %818 = vmatprep.subr.mxu0 0.0
        %819 = vmatpush1.msra.mxu0 0.0
        %820 = vmatprep.subr.mxu0 0.0
        %821 = vmatpush1.msra.mxu0 0.0
        %822 = vmatprep.subr.mxu0 0.0
        %823 = vmatpush1.msra.mxu0 0.0
        %824 = vmatprep.subr.mxu0 0.0
        %825 = vmatpush1.msra.mxu0 0.0
        %826 = vmatprep.subr.mxu0 0.0
        %827 = vmatpush1.msra.mxu0 0.0
        %828 = vmatprep.subr.mxu0 0.0
        %829 = vmatpush1.msra.mxu0 0.0
        %830 = vmatprep.subr.mxu0 0.0
        %831 = vmatpush1.msra.mxu0 0.0
        %832 = vmatprep.subr.mxu0 0.0
        %833 = vmatpush1.msra.mxu0 0.0
        %834 = vmatprep.subr.mxu0 0.0
        %835 = vmatpush1.msra.mxu0 0.0
        %836 = vmatprep.subr.mxu0 0.0
        %837 = vmatpush1.msra.mxu0 0.0
        %838 = vmatprep.subr.mxu0 0.0
        %839 = vmatpush1.msra.mxu0 0.0
        %840 = vmatprep.mubr.f32.mxu0 0.0
        %841 = vmatmul.mubr.f32.gmra.mrb[0].mxu0 %v774
        %v842 = vpop.f32.mrb[0].mxu0
        %v843 = vadd.f32 %v771, %v842
        %v844 = vpop.f32.mrb[0].mxu0
        %845 = vdwg.mxu0
        %vm846 = vcmp.ge.f32.partialorder %v843, 0.0
        %v847 = vmul.f32 %v843, 0.2
        %v848 = vsel %vm846, %v843, %v847
        %v849 = vld [vmem:[#allocation2 + $0x180] sm:$0xff]
        %v850 = vld [vmem:[#allocation2 + $0x188] sm:$0xff]
        %v851 = vld [vmem:[%s2 + $0x7] sm:$0x1]
        %v852 = vlaneseq
        %v853 = vshrl.u32 %v852, 7
        %v854 = vsub.s32 0, %v853
        %v855 = vrot.slane %v851, %v854
        %v857 = vsel %vm772, %v848, 0
        %859 = vmatprep.subr.mxu0 0.0
        %860 = vmatpush1.msra.mxu0 %v849
        %861 = vmatprep.subr.mxu0 0.0
        %862 = vmatpush1.msra.mxu0 %v850
        %863 = vmatprep.subr.mxu0 0.0
        %864 = vmatpush1.msra.mxu0 0.0
        %865 = vmatprep.subr.mxu0 0.0
        %866 = vmatpush1.msra.mxu0 0.0
        %867 = vmatprep.subr.mxu0 0.0
        %868 = vmatpush1.msra.mxu0 0.0
        %869 = vmatprep.subr.mxu0 0.0
        %870 = vmatpush1.msra.mxu0 0.0
        %871 = vmatprep.subr.mxu0 0.0
        %872 = vmatpush1.msra.mxu0 0.0
        %873 = vmatprep.subr.mxu0 0.0
        %874 = vmatpush1.msra.mxu0 0.0
        %875 = vmatprep.subr.mxu0 0.0
        %876 = vmatpush1.msra.mxu0 0.0
        %877 = vmatprep.subr.mxu0 0.0
        %878 = vmatpush1.msra.mxu0 0.0
        %879 = vmatprep.subr.mxu0 0.0
        %880 = vmatpush1.msra.mxu0 0.0
        %881 = vmatprep.subr.mxu0 0.0
        %882 = vmatpush1.msra.mxu0 0.0
        %883 = vmatprep.subr.mxu0 0.0
        %884 = vmatpush1.msra.mxu0 0.0
        %885 = vmatprep.subr.mxu0 0.0
        %886 = vmatpush1.msra.mxu0 0.0
        %887 = vmatprep.subr.mxu0 0.0
        %888 = vmatpush1.msra.mxu0 0.0
        %889 = vmatprep.subr.mxu0 0.0
        %890 = vmatpush1.msra.mxu0 0.0
        %891 = vmatprep.subr.mxu0 0.0
        %892 = vmatpush1.msra.mxu0 0.0
        %893 = vmatprep.subr.mxu0 0.0
        %894 = vmatpush1.msra.mxu0 0.0
        %895 = vmatprep.subr.mxu0 0.0
        %896 = vmatpush1.msra.mxu0 0.0
        %897 = vmatprep.subr.mxu0 0.0
        %898 = vmatpush1.msra.mxu0 0.0
        %899 = vmatprep.subr.mxu0 0.0
        %900 = vmatpush1.msra.mxu0 0.0
        %901 = vmatprep.subr.mxu0 0.0
        %902 = vmatpush1.msra.mxu0 0.0
        %903 = vmatprep.subr.mxu0 0.0
        %904 = vmatpush1.msra.mxu0 0.0
        %905 = vmatprep.subr.mxu0 0.0
        %906 = vmatpush1.msra.mxu0 0.0
        %907 = vmatprep.subr.mxu0 0.0
        %908 = vmatpush1.msra.mxu0 0.0
        %909 = vmatprep.subr.mxu0 0.0
        %910 = vmatpush1.msra.mxu0 0.0
        %911 = vmatprep.subr.mxu0 0.0
        %912 = vmatpush1.msra.mxu0 0.0
        %913 = vmatprep.subr.mxu0 0.0
        %914 = vmatpush1.msra.mxu0 0.0
        %915 = vmatprep.subr.mxu0 0.0
        %916 = vmatpush1.msra.mxu0 0.0
        %917 = vmatprep.subr.mxu0 0.0
        %918 = vmatpush1.msra.mxu0 0.0
        %919 = vmatprep.subr.mxu0 0.0
        %920 = vmatpush1.msra.mxu0 0.0
        %921 = vmatprep.subr.mxu0 0.0
        %922 = vmatpush1.msra.mxu0 0.0
        %923 = vmatprep.mubr.f32.mxu0 0.0
        %924 = vmatmul.mubr.f32.gmra.mrb[0].mxu0 %v857
        %v925 = vpop.f32.mrb[0].mxu0
        %v926 = vadd.f32 %v855, %v925
        %v927 = vpop.f32.mrb[0].mxu0
        %928 = vdwg.mxu0
        %vm929 = vcmask 48128
        %v930 = vsel %vm929, %v926, -inf
        %931 = vmax.xlane.f32.xlu0 %v930
        %v932 = vpop.xlane.xlu0 %931
        %v933 = vsub.f32 %v926, %v932
        %v934 = vmul.f32 %v933, 1.442695
        %v935 = vpow.pop %v934
        %v936 = vsel %vm929, %v935, 0.0
        %937 = vadd.xlane.f32.xlu0 %v936
        %v938 = vpop.xlane.xlu0 %937
        %v939 = vrcp.pop %v938
        %v940 = vmul.f32 %v938, %v939
        %v941 = vsub.f32 2.0, %v940
        %v942 = vmul.f32 %v939, %v941
        %v943 = vmul.f32 %v935, %v942
        %v944 = vld [vmem:[#allocation2 + $0x190] sm:$0xff]
        %v945 = vld [vmem:[#allocation2 + $0x198] sm:$0xff]
        %v946 = vld [vmem:[%s2 + $0x8] sm:$0x1]
        %v947 = vld [vmem:[#allocation2 + $0x1a0] sm:$0x3f]
        %v949 = vsel %vm929, %v943, 0
        %vm951 = vcmask 1045504
        %v953 = vsel %vm951, %v947, 0
        %955 = vmatprep.subr.mxu0 0.0
        %956 = vmatpush1.msra.mxu0 %v953
        %957 = vmatprep.subr.mxu0 0.0
        %958 = vmatpush1.msra.mxu0 0.0
        %959 = vmatprep.subr.mxu0 0.0
        %960 = vmatpush1.msra.mxu0 0.0
        %961 = vmatprep.subr.mxu0 0.0
        %962 = vmatpush1.msra.mxu0 0.0
        %963 = vmatprep.subr.mxu0 0.0
        %964 = vmatpush1.msra.mxu0 0.0
        %965 = vmatprep.subr.mxu0 0.0
        %966 = vmatpush1.msra.mxu0 0.0
        %967 = vmatprep.subr.mxu0 0.0
        %968 = vmatpush1.msra.mxu0 0.0
        %969 = vmatprep.subr.mxu0 0.0
        %970 = vmatpush1.msra.mxu0 0.0
        %971 = vmatprep.subr.mxu0 0.0
        %972 = vmatpush1.msra.mxu0 0.0
        %973 = vmatprep.subr.mxu0 0.0
        %974 = vmatpush1.msra.mxu0 0.0
        %975 = vmatprep.subr.mxu0 0.0
        %976 = vmatpush1.msra.mxu0 0.0
        %977 = vmatprep.subr.mxu0 0.0
        %978 = vmatpush1.msra.mxu0 0.0
        %979 = vmatprep.subr.mxu0 0.0
        %980 = vmatpush1.msra.mxu0 0.0
        %981 = vmatprep.subr.mxu0 0.0
        %982 = vmatpush1.msra.mxu0 0.0
        %983 = vmatprep.subr.mxu0 0.0
        %984 = vmatpush1.msra.mxu0 0.0
        %985 = vmatprep.subr.mxu0 0.0
        %986 = vmatpush1.msra.mxu0 0.0
        %987 = vmatprep.subr.mxu0 0.0
        %988 = vmatpush1.msra.mxu0 0.0
        %989 = vmatprep.subr.mxu0 0.0
        %990 = vmatpush1.msra.mxu0 0.0
        %991 = vmatprep.subr.mxu0 0.0
        %992 = vmatpush1.msra.mxu0 0.0
        %993 = vmatprep.subr.mxu0 0.0
        %994 = vmatpush1.msra.mxu0 0.0
        %995 = vmatprep.subr.mxu0 0.0
        %996 = vmatpush1.msra.mxu0 0.0
        %997 = vmatprep.subr.mxu0 0.0
        %998 = vmatpush1.msra.mxu0 0.0
        %999 = vmatprep.subr.mxu0 0.0
        %1000 = vmatpush1.msra.mxu0 0.0
        %1001 = vmatprep.subr.mxu0 0.0
        %1002 = vmatpush1.msra.mxu0 0.0
        %1003 = vmatprep.subr.mxu0 0.0
        %1004 = vmatpush1.msra.mxu0 0.0
        %1005 = vmatprep.subr.mxu0 0.0
        %1006 = vmatpush1.msra.mxu0 0.0
        %1007 = vmatprep.subr.mxu0 0.0
        %1008 = vmatpush1.msra.mxu0 0.0
        %1009 = vmatprep.subr.mxu0 0.0
        %1010 = vmatpush1.msra.mxu0 0.0
        %1011 = vmatprep.subr.mxu0 0.0
        %1012 = vmatpush1.msra.mxu0 0.0
        %1013 = vmatprep.subr.mxu0 0.0
        %1014 = vmatpush1.msra.mxu0 0.0
        %1015 = vmatprep.subr.mxu0 0.0
        %1016 = vmatpush1.msra.mxu0 0.0
        %1017 = vmatprep.subr.mxu0 0.0
        %1018 = vmatpush1.msra.mxu0 0.0
        %1019 = vmatprep.mubr.f32.mxu0 0.0
        %1020 = vmatmul.mubr.f32.gmra.mrb[0].mxu0 %v949
        %v1021 = vpop.f32.mrb[0].mxu0
        %v1022 = vadd.f32 0.0, %v1021
        %v1023 = vpop.f32.mrb[0].mxu0
        %1024 = vdwg.mxu0
        %1025 = vmatprep.subr.mxu0 0.0
        %1026 = vmatpush1.msra.mxu0 %v944
        %1027 = vmatprep.subr.mxu0 0.0
        %1028 = vmatpush1.msra.mxu0 %v945
        %1029 = vmatprep.subr.mxu0 0.0
        %1030 = vmatpush1.msra.mxu0 0.0
        %1031 = vmatprep.subr.mxu0 0.0
        %1032 = vmatpush1.msra.mxu0 0.0
        %1033 = vmatprep.subr.mxu0 0.0
        %1034 = vmatpush1.msra.mxu0 0.0
        %1035 = vmatprep.subr.mxu0 0.0
        %1036 = vmatpush1.msra.mxu0 0.0
        %1037 = vmatprep.subr.mxu0 0.0
        %1038 = vmatpush1.msra.mxu0 0.0
        %1039 = vmatprep.subr.mxu0 0.0
        %1040 = vmatpush1.msra.mxu0 0.0
        %1041 = vmatprep.subr.mxu0 0.0
        %1042 = vmatpush1.msra.mxu0 0.0
        %1043 = vmatprep.subr.mxu0 0.0
        %1044 = vmatpush1.msra.mxu0 0.0
        %1045 = vmatprep.subr.mxu0 0.0
        %1046 = vmatpush1.msra.mxu0 0.0
        %1047 = vmatprep.subr.mxu0 0.0
        %1048 = vmatpush1.msra.mxu0 0.0
        %1049 = vmatprep.subr.mxu0 0.0
        %1050 = vmatpush1.msra.mxu0 0.0
        %1051 = vmatprep.subr.mxu0 0.0
        %1052 = vmatpush1.msra.mxu0 0.0
        %1053 = vmatprep.subr.mxu0 0.0
        %1054 = vmatpush1.msra.mxu0 0.0
        %1055 = vmatprep.subr.mxu0 0.0
        %1056 = vmatpush1.msra.mxu0 0.0
        %1057 = vmatprep.subr.mxu0 0.0
        %1058 = vmatpush1.msra.mxu0 0.0
        %1059 = vmatprep.subr.mxu0 0.0
        %1060 = vmatpush1.msra.mxu0 0.0
        %1061 = vmatprep.subr.mxu0 0.0
        %1062 = vmatpush1.msra.mxu0 0.0
        %1063 = vmatprep.subr.mxu0 0.0
        %1064 = vmatpush1.msra.mxu0 0.0
        %1065 = vmatprep.subr.mxu0 0.0
        %1066 = vmatpush1.msra.mxu0 0.0
        %1067 = vmatprep.subr.mxu0 0.0
        %1068 = vmatpush1.msra.mxu0 0.0
        %1069 = vmatprep.subr.mxu0 0.0
        %1070 = vmatpush1.msra.mxu0 0.0
        %1071 = vmatprep.subr.mxu0 0.0
        %1072 = vmatpush1.msra.mxu0 0.0
        %1073 = vmatprep.subr.mxu0 0.0
        %1074 = vmatpush1.msra.mxu0 0.0
        %1075 = vmatprep.subr.mxu0 0.0
        %1076 = vmatpush1.msra.mxu0 0.0
        %1077 = vmatprep.subr.mxu0 0.0
        %1078 = vmatpush1.msra.mxu0 0.0
        %1079 = vmatprep.subr.mxu0 0.0
        %1080 = vmatpush1.msra.mxu0 0.0
        %1081 = vmatprep.subr.mxu0 0.0
        %1082 = vmatpush1.msra.mxu0 0.0
        %1083 = vmatprep.subr.mxu0 0.0
        %1084 = vmatpush1.msra.mxu0 0.0
        %1085 = vmatprep.subr.mxu0 0.0
        %1086 = vmatpush1.msra.mxu0 0.0
        %1087 = vmatprep.subr.mxu0 0.0
        %1088 = vmatpush1.msra.mxu0 0.0
        %1089 = vmatprep.mubr.f32.mxu0 0.0
        %1090 = vmatmul.mubr.f32.gmra.mrb[0].mxu0 %v774
        %v1091 = vpop.f32.mrb[0].mxu0
        %v1092 = vadd.f32 %v1022, %v1091
        %v1093 = vpop.f32.mrb[0].mxu0
        %1094 = vdwg.mxu0
        %v1095 = vlaneseq
        %v1096 = vshrl.u32 %v1095, 7
        %v1097 = vsub.s32 0, %v1096
        %v1098 = vrot.slane %v946, %v1097
        %v1099 = vadd.f32 %v1092, %v1098
        %vm1100 = vcmp.ge.f32.partialorder %v1099, 0.0
        %v1101 = vmul.f32 %v1099, 0.2
        %v1102 = vsel %vm1100, %v1099, %v1101
        %v1103 = vld [vmem:[#allocation2 + $0x1a8] sm:$0xff]
        %v1104 = vld [vmem:[#allocation2 + $0x1b0] sm:$0xff]
        %v1105 = vld [vmem:[%s2 + $0xa] sm:$0x1]
        %v1106 = vlaneseq
        %v1107 = vshrl.u32 %v1106, 7
        %v1108 = vsub.s32 0, %v1107
        %v1109 = vrot.slane %v1105, %v1108
        %v1111 = vsel %vm772, %v1102, 0
        %1113 = vmatprep.subr.mxu0 0.0
        %1114 = vmatpush1.msra.mxu0 %v1103
        %1115 = vmatprep.subr.mxu0 0.0
        %1116 = vmatpush1.msra.mxu0 %v1104
        %1117 = vmatprep.subr.mxu0 0.0
        %1118 = vmatpush1.msra.mxu0 0.0
        %1119 = vmatprep.subr.mxu0 0.0
        %1120 = vmatpush1.msra.mxu0 0.0
        %1121 = vmatprep.subr.mxu0 0.0
        %1122 = vmatpush1.msra.mxu0 0.0
        %1123 = vmatprep.subr.mxu0 0.0
        %1124 = vmatpush1.msra.mxu0 0.0
        %1125 = vmatprep.subr.mxu0 0.0
        %1126 = vmatpush1.msra.mxu0 0.0
        %1127 = vmatprep.subr.mxu0 0.0
        %1128 = vmatpush1.msra.mxu0 0.0
        %1129 = vmatprep.subr.mxu0 0.0
        %1130 = vmatpush1.msra.mxu0 0.0
        %1131 = vmatprep.subr.mxu0 0.0
        %1132 = vmatpush1.msra.mxu0 0.0
        %1133 = vmatprep.subr.mxu0 0.0
        %1134 = vmatpush1.msra.mxu0 0.0
        %1135 = vmatprep.subr.mxu0 0.0
        %1136 = vmatpush1.msra.mxu0 0.0
        %1137 = vmatprep.subr.mxu0 0.0
        %1138 = vmatpush1.msra.mxu0 0.0
        %1139 = vmatprep.subr.mxu0 0.0
        %1140 = vmatpush1.msra.mxu0 0.0
        %1141 = vmatprep.subr.mxu0 0.0
        %1142 = vmatpush1.msra.mxu0 0.0
        %1143 = vmatprep.subr.mxu0 0.0
        %1144 = vmatpush1.msra.mxu0 0.0
        %1145 = vmatprep.subr.mxu0 0.0
        %1146 = vmatpush1.msra.mxu0 0.0
        %1147 = vmatprep.subr.mxu0 0.0
        %1148 = vmatpush1.msra.mxu0 0.0
        %1149 = vmatprep.subr.mxu0 0.0
        %1150 = vmatpush1.msra.mxu0 0.0
        %1151 = vmatprep.subr.mxu0 0.0
        %1152 = vmatpush1.msra.mxu0 0.0
        %1153 = vmatprep.subr.mxu0 0.0
        %1154 = vmatpush1.msra.mxu0 0.0
        %1155 = vmatprep.subr.mxu0 0.0
        %1156 = vmatpush1.msra.mxu0 0.0
        %1157 = vmatprep.subr.mxu0 0.0
        %1158 = vmatpush1.msra.mxu0 0.0
        %1159 = vmatprep.subr.mxu0 0.0
        %1160 = vmatpush1.msra.mxu0 0.0
        %1161 = vmatprep.subr.mxu0 0.0
        %1162 = vmatpush1.msra.mxu0 0.0
        %1163 = vmatprep.subr.mxu0 0.0
        %1164 = vmatpush1.msra.mxu0 0.0
        %1165 = vmatprep.subr.mxu0 0.0
        %1166 = vmatpush1.msra.mxu0 0.0
        %1167 = vmatprep.subr.mxu0 0.0
        %1168 = vmatpush1.msra.mxu0 0.0
        %1169 = vmatprep.subr.mxu0 0.0
        %1170 = vmatpush1.msra.mxu0 0.0
        %1171 = vmatprep.subr.mxu0 0.0
        %1172 = vmatpush1.msra.mxu0 0.0
        %1173 = vmatprep.subr.mxu0 0.0
        %1174 = vmatpush1.msra.mxu0 0.0
        %1175 = vmatprep.subr.mxu0 0.0
        %1176 = vmatpush1.msra.mxu0 0.0
        %1177 = vmatprep.mubr.f32.mxu0 0.0
        %1178 = vmatmul.mubr.f32.gmra.mrb[0].mxu0 %v1111
        %v1179 = vpop.f32.mrb[0].mxu0
        %v1180 = vadd.f32 %v1109, %v1179
        %v1181 = vpop.f32.mrb[0].mxu0
        %1182 = vdwg.mxu0
        %v1183 = vmax.f32 %v1180, 0.0
        %v1184 = vand.u32 2147483647, %v1180
        %v1185 = vsub.f32 0.0, %v1184
        %v1186 = vmul.f32 %v1185, 1.442695
        %v1187 = vpow.pop %v1186
        %v1188 = vadd.f32 %v1187, 1.0
        %v1189 = vlog2.pop %v1188
        %v1190 = vmul.f32 %v1189, 0.6931472
        %v1191 = vadd.f32 %v1183, %v1190
        %v1192 = vadd.f32 %v1191, 0.0001
        %1193 = vrot.lane.b32.xlu0 %v570, 16
        %v1194 = vpop.permute.xlu0 %1193
        %1196 = vrot.lane.b32.xlu0 %v586, 8
        %v1197 = vpop.permute.xlu0 %1196
        %1199 = vrot.lane.b32.xlu0 %v752, 40
        %v1200 = vpop.permute.xlu0 %1199
        %1203 = vrot.lane.b32.xlu0 %v764, 40
        %v1204 = vpop.permute.xlu0 %1203
        %1207 = vrot.lane.b32.xlu0 %v926, 72
        %v1208 = vpop.permute.xlu0 %1207
        %1210 = vrot.lane.b32.xlu0 %v943, 80
        %v1211 = vpop.permute.xlu0 %1210
        %1214 = vrot.lane.b32.xlu0 %v1180, 88
        %v1215 = vpop.permute.xlu0 %1214
        %1218 = vrot.lane.b32.xlu0 %v1192, 88
        %v1219 = vpop.permute.xlu0 %1218
        %v1221 = vsel %vm561, %v1194, 0.0
        %vm1222 = vcmask 64512
        %v1223 = vsel %vm1222, %v1221, %v1197
        %vm1224 = vcmask 326656
        %v1225 = vsel %vm1224, %v1223, %v1200
        %vm1226 = vcmask 457728
        %v1227 = vsel %vm1226, %v1225, %v1204
        %vm1228 = vcmask 588800
        %v1229 = vsel %vm1228, %v1227, %v1208
        %vm1230 = vcmask 637952
        %v1231 = vsel %vm1230, %v1229, 0.0
        %vm1232 = vcmask 654336
        %v1233 = vsel %vm1232, %v1231, %v1211
        %vm1234 = vcmask 703488
        %v1235 = vsel %vm1234, %v1233, 0.0
        %vm1236 = vcmask 719872
        %v1237 = vsel %vm1236, %v1235, %v1215
        %vm1238 = vcmask 850944
        %v1239 = vsel %vm1238, %v1237, %v1219
        %vm1240 = vcmask 982016
        %v1241 = vsel %vm1240, %v1239, 0.0
        %1242 = vst [vmem:[%s180] sm:$0xff] %v1241
        %p1243 = scmp.lt.s32.totalorder %s15, 1
        %s1244 = scalar_select %p1243, %s15, 1
        %s1245 = smul.addr %s1244, 8
        %s1246 = scalar_lea.vmem %s3, %s1245
        // Predicated region
        $region37: #{mmaavinet_forward.1} parent=31 // pred_check
          %p1247 = pneg %p101
        $region38: #{mmaavinet_forward.1} parent=31 // pred_check_branch
          %1249 = sbr.rel (%p1247) target = $region40
        $region39: #{mmaavinet_forward.1} parent=31 // pred_region
          _
        $region40: #{mmaavinet_forward.1} parent=31 // pred_fallthru
          _
      $region32: #{mmaavinet_forward.1} parent=5 // pred_fallthru
        _
      %p1250 = scmp.le.s32.totalorder 2, %s10
      // Predicated region
      $region41: #{mmaavinet_forward.1} parent=5 // pred_check
        %p1251 = pneg %p1250
      $region42: #{mmaavinet_forward.1} parent=5 // pred_check_branch
        %1253 = sbr.rel (%p1251) target = $region44
      $region43: #{mmaavinet_forward.1} parent=5 // pred_region
        %s1254 = ssub.s32 %s10, 2
        // Predicated region
        $region45: #{mmaavinet_forward.1} parent=43 // pred_check
          %p1255 = pneg %p107
        $region46: #{mmaavinet_forward.1} parent=43 // pred_check_branch
          %1257 = sbr.rel (%p1255) target = $region48
        $region47: #{mmaavinet_forward.1} parent=43 // pred_region
          %p1258 = scmp.lt.s32.totalorder %s16, 1
          %s1259 = scalar_select %p1258, %s16, 1
          %s1260 = smul.addr %s1259, 8
          %s1261 = scalar_lea.vmem %s3, %s1260
        $region48: #{mmaavinet_forward.1} parent=43 // pred_fallthru
          _
      $region44: #{mmaavinet_forward.1} parent=5 // pred_fallthru
        _
    $region6: #{mmaavinet_forward.1} parent=1 // loop_footer
      %s14 = sadd.s32 1, %s10
    $region7: #{mmaavinet_forward.1} parent=1 // loop_footer_branch
      %9 = sbr.rel target = $region3
    $region8: #{mmaavinet_forward.1} parent=1 // loop_exit
      _
    %1262 = vsyncpa [#allocation3], 1
    %s1263 = scalar_lea.sflag [#allocation3], 1
    %1264 = vsyncpa %s1263, 1

</llo_original>
